<compile_context>
chip_gen: v6e
topology: v6e:2x2x1
jax: 0.10.0
libtpu: 0.0.40
codegen_flags: <defaults>
</compile_context>

<pallas_src>
import functools

import jax
import jax.numpy as jnp
from jax.experimental import pallas as pl
from jax.experimental.pallas import tpu as pltpu

_SUBLANES = 8
_LANES = 128


def _round_up(n, m):
    return ((n + m - 1) // m) * m


def _slab_layout(input_size, hidden_size, num_layers):
    """Row layout of the packed weight slab.

    Every block starts on an 8-row (sublane) boundary so the in-kernel static
    slices never cross a tile boundary.  Returns ({name: (row0, nrows)}, rows).
    """
    H, L = hidden_size, num_layers
    layout = {}
    off = 0

    def add(name, nrows):
        nonlocal off
        layout[name] = (off, nrows)
        off += _round_up(nrows, _SUBLANES)

    add("w_ih0", input_size)          # (in, 4H)  layer-0 input weights^T
    add("w_hh0", H)                   # (H, 4H)   layer-0 recurrent weights^T
    add("b0", 1)                      # (1, 4H)   layer-0 fused bias
    for l in range(1, L):
        add(f"w{l}", 2 * H)           # (2H, 4H)  [w_ih^T ; w_hh^T] stacked
        add(f"b{l}", 1)               # (1, 4H)
    add("fc_w", H)                    # (H, O) zero-padded to slab width
    add("fc_b", 1)                    # (1, O) zero-padded
    return layout, off


# ----------------------------- Pallas kernel --------------------------------


def _make_fused_lstm_kernel(seq_len, b_pad, input_size, hidden_size,
                            num_layers, slab_width):
    """Fused kernel: L LSTM layers (wavefront over (layer,time)) + final FC.

    Refs (single invocation, everything resident in VMEM):
      inputs : x2d (T*B_pad, in)  time-major rows (row t*B_pad + b == x[b,t,:])
               w   (rows, SW)     packed weight slab (see _slab_layout)
      output : out (2*B_pad, SW)  rows [0, B_pad)      = FC output (lane-dense)
                                  rows [B_pad, 2*B_pad) = [h0|c0|h1|c1|...]
    """
    T, BP, H, L, SW = seq_len, b_pad, hidden_size, num_layers, slab_width
    layout, _ = _slab_layout(input_size, H, L)

    def blk(w_ref, name):
        r0, n = layout[name]
        return w_ref[r0:r0 + n, :]

    def kernel(x_ref, w_ref, out_ref):
        f32 = jnp.float32

        # ---- one-time loads / hoists (outside the recurrence) -------------
        # Layer-0 input projection over the whole sequence: ONE matmul.
        seq = x_ref[...]                                         # (T*BP, in)
        xp0 = (jnp.dot(seq, blk(w_ref, "w_ih0"),
                       preferred_element_type=f32)
               + blk(w_ref, "b0"))                               # (T*BP, SW)

        w_hh0 = blk(w_ref, "w_hh0")                              # (H, SW)
        w_l = [None] + [blk(w_ref, f"w{l}") for l in range(1, L)]
        bias_l = [None] + [jnp.broadcast_to(blk(w_ref, f"b{l}"), (BP, SW))
                           for l in range(1, L)]                 # hoisted bcast

        # Lane mask selecting the cell-candidate gate -> tanh, else sigmoid.
        lane = jax.lax.broadcasted_iota(jnp.int32, (BP, SW), 1)
        is_g_lane = (lane >= 2 * H) & (lane < 3 * H)

        h = [jnp.zeros((BP, H), f32) for _ in range(L)]
        c = [jnp.zeros((BP, H), f32) for _ in range(L)]

        def cell(g, l):
            # Whole-vreg activations (EUP), then H-wide gate slices.
            act = jnp.where(is_g_lane, jnp.tanh(g), jax.nn.sigmoid(g))
            i_g = act[:, 0 * H:1 * H]
            f_g = act[:, 1 * H:2 * H]
            g_g = act[:, 2 * H:3 * H]
            o_g = act[:, 3 * H:4 * H]
            c[l] = f_g * c[l] + i_g * g_g
            h[l] = o_g * jnp.tanh(c[l])

        # ---- wavefront over (layer, time): T + L - 1 serial steps ----------
        # At unrolled step s, layer l processes timestep t = s - l.  Layers are
        # visited top-down so each layer reads the previous-step hidden of the
        # layer below (classic wavefront: serial path T+L-1 instead of T*L).
        for s in range(T + L - 1):
            for l in range(L - 1, -1, -1):
                t = s - l
                if not (0 <= t < T):
                    continue
                if l == 0:
                    g = (xp0[t * BP:(t + 1) * BP, :]
                         + jnp.dot(h[0], w_hh0, preferred_element_type=f32))
                else:
                    # Single K=2H matmul: [h_below | h_prev] @ [W_ih^T; W_hh^T]
                    lhs = jnp.concatenate([h[l - 1], h[l]], axis=1)  # (BP, 2H)
                    g = (jnp.dot(lhs, w_l[l], preferred_element_type=f32)
                         + bias_l[l])
                cell(g, l)

        # ---- epilogue: FC on last hidden of top layer + final states -------
        fc = (jnp.dot(h[L - 1], blk(w_ref, "fc_w"),
                      preferred_element_type=f32)
              + blk(w_ref, "fc_b"))                              # (BP, SW)
        state = jnp.concatenate(
            [s_ for l in range(L) for s_ in (h[l], c[l])], axis=1)  # (BP, 2LH)
        if state.shape[1] < SW:
            state = jnp.concatenate(
                [state, jnp.zeros((BP, SW - state.shape[1]), f32)], axis=1)
        out_ref[0:BP, :] = fc
        out_ref[BP:2 * BP, :] = state

    return kernel


# ------------------------------- Wrappers -----------------------------------


def prepare_fused_params(params):
    """One-time weight packing (call OUTSIDE jit): transpose weights, pre-add
    the two bias vectors, stack layer>=1 [W_ih^T; W_hh^T], and lay everything
    out in a single lane-dense (rows, SW) f32 slab (one DMA at kernel launch).
    """
    lstm = params["lstm"]
    L = len(lstm)
    H = int(lstm[0][1].shape[1])
    input_size = int(lstm[0][0].shape[1])
    O = int(params["fc_w"].shape[0])
    SW = _round_up(max(4 * H, O), _LANES)
    layout, rows = _slab_layout(input_size, H, L)

    slab = jnp.zeros((rows, SW), jnp.float32)

    def put(s, name, block):
        r0, n = layout[name]
        block = jnp.asarray(block, jnp.float32)
        return s.at[r0:r0 + n, :block.shape[1]].set(block)

    w_ih0, w_hh0, b_ih0, b_hh0 = lstm[0]
    slab = put(slab, "w_ih0", w_ih0.T)                       # (in, 4H)
    slab = put(slab, "w_hh0", w_hh0.T)                       # (H, 4H)
    slab = put(slab, "b0", (b_ih0 + b_hh0).reshape(1, -1))   # (1, 4H)
    for l in range(1, L):
        w_ih, w_hh, b_ih, b_hh = lstm[l]
        slab = put(slab, f"w{l}", jnp.concatenate([w_ih.T, w_hh.T], axis=0))
        slab = put(slab, f"b{l}", (b_ih + b_hh).reshape(1, -1))
    slab = put(slab, "fc_w", params["fc_w"].T)               # (H, O)
    slab = put(slab, "fc_b", params["fc_b"].reshape(1, -1))  # (1, O)

    return {"slab": slab, "input_size": input_size, "hidden_size": H,
            "num_layers": L, "output_size": O}


@functools.partial(jax.jit, static_argnames=("input_size", "hidden_size",
                                             "num_layers", "output_size"))
def lstm_model_forward(x, slab, input_size, hidden_size, num_layers,
                       output_size):
    """Equivalent of LSTMModel.forward.

    x: (B, T, input_size), batch_first like the PyTorch module.
    Returns (out (B, output_size), (hn (L, B, H), cn (L, B, H))).
    """
    B, T, I = x.shape
    H, L, O = hidden_size, num_layers, output_size
    assert I == input_size
    BP = _round_up(max(B, 1), _SUBLANES)     # pad batch to sublane granule
    SW = slab.shape[1]
    assert 2 * L * H <= SW and O <= SW, "state/output wider than output slab"

    # Time-major 2-D layout, zero-padded batch: row t*BP + b == x[b, t, :].
    x_tm = jnp.transpose(x, (1, 0, 2)).astype(jnp.float32)   # (T, B, I)
    x_tm = jnp.pad(x_tm, ((0, 0), (0, BP - B), (0, 0)))      # (T, BP, I)
    x2d = x_tm.reshape(T * BP, I)

    def vmem():
        return pl.BlockSpec(memory_space=pltpu.MemorySpace.VMEM)

    out_slab = pl.pallas_call(
        _make_fused_lstm_kernel(T, BP, I, H, L, SW),
        out_shape=jax.ShapeDtypeStruct((2 * BP, SW), jnp.float32),
        in_specs=[vmem(), vmem()],
        out_specs=vmem(),
    )(x2d, slab)

    out = out_slab[:B, :O]
    state = out_slab[BP:BP + B, :]                            # (B, >=2LH)
    hn = jnp.stack([state[:, (2 * l) * H:(2 * l + 1) * H] for l in range(L)], 0)
    cn = jnp.stack([state[:, (2 * l + 1) * H:(2 * l + 2) * H] for l in range(L)], 0)
    return out, (hn, cn)


# --------------------------- Pure-JAX reference ------------------------------


def lstm_model_ref(x, params, hidden_size, num_layers):
    B, T, _ = x.shape
    H = hidden_size
    inp = x
    hns, cns = [], []
    for layer in range(num_layers):
        w_ih, w_hh, b_ih, b_hh = params["lstm"][layer]

        def step(carry, x_t):
            h, c = carry
            g = x_t @ w_ih.T + h @ w_hh.T + b_ih + b_hh
            i = jax.nn.sigmoid(g[:, 0 * H:1 * H])
            f = jax.nn.sigmoid(g[:, 1 * H:2 * H])
            gg = jnp.tanh(g[:, 2 * H:3 * H])
            o = jax.nn.sigmoid(g[:, 3 * H:4 * H])
            c = f * c + i * gg
            h = o * jnp.tanh(c)
            return (h, c), h

        init = (jnp.zeros((B, H), jnp.float32), jnp.zeros((B, H), jnp.float32))
        (hn, cn), hs = jax.lax.scan(step, init, jnp.transpose(inp, (1, 0, 2)))
        inp = jnp.transpose(hs, (1, 0, 2))
        hns.append(hn)
        cns.append(cn)
    out = inp[:, -1, :] @ params["fc_w"].T + params["fc_b"]
    return out, (jnp.stack(hns, 0), jnp.stack(cns, 0))


# ---------------------------------- Main -------------------------------------


def init_params(key, input_size, hidden_size, output_size, num_layers):
    """Deterministic synthetic init (uniform like PyTorch's default scale)."""
    H = hidden_size
    bound = 1.0 / jnp.sqrt(H)
    lstm_params = []
    for layer in range(num_layers):
        in_sz = input_size if layer == 0 else H
        key, k1, k2, k3, k4 = jax.random.split(key, 5)
        w_ih = jax.random.uniform(k1, (4 * H, in_sz), jnp.float32, -bound, bound)
        w_hh = jax.random.uniform(k2, (4 * H, H), jnp.float32, -bound, bound)
        b_ih = jax.random.uniform(k3, (4 * H,), jnp.float32, -bound, bound)
        b_hh = jax.random.uniform(k4, (4 * H,), jnp.float32, -bound, bound)
        lstm_params.append((w_ih, w_hh, b_ih, b_hh))
    key, kw, kb = jax.random.split(key, 3)
    fc_bound = 1.0 / jnp.sqrt(H)
    fc_w = jax.random.uniform(kw, (output_size, H), jnp.float32, -fc_bound, fc_bound)
    fc_b = jax.random.uniform(kb, (output_size,), jnp.float32, -fc_bound, fc_bound)
    return {"lstm": lstm_params, "fc_w": fc_w, "fc_b": fc_b}


if __name__ == "__main__":
    B, T = 2, 8
    input_size, hidden_size, output_size, num_layers = 16, 32, 8, 2

    key = jax.random.PRNGKey(0)
    key, kx = jax.random.split(key)
    x = jax.random.normal(kx, (B, T, input_size), jnp.float32)
    params = init_params(key, input_size, hidden_size, output_size, num_layers)

    # One-time weight packing (outside the jitted forward).
    fused = prepare_fused_params(params)

    out, (hn, cn) = lstm_model_forward(
        x, fused["slab"],
        input_size=fused["input_size"], hidden_size=fused["hidden_size"],
        num_layers=fused["num_layers"], output_size=fused["output_size"])
    jax.block_until_ready((out, hn, cn))

    out_ref, (hn_ref, cn_ref) = lstm_model_ref(x, params, hidden_size, num_layers)
    assert out.shape == (B, output_size)
    assert hn.shape == (num_layers, B, hidden_size)
    assert cn.shape == (num_layers, B, hidden_size)
    assert jnp.allclose(out, out_ref, atol=1e-5, rtol=1e-5)
    assert jnp.allclose(hn, hn_ref, atol=1e-5, rtol=1e-5)
    assert jnp.allclose(cn, cn_ref, atol=1e-5, rtol=1e-5)

    print("KERNEL_OK")
</pallas_src>

<mosaic_0001>
module attributes {stable_mosaic.version = 11 : i64} {
  func.func @kernel(%arg0: memref<64x16xf32, #tpu.memory_space<vmem>>, %arg1: memref<168x128xf32, #tpu.memory_space<vmem>>, %arg2: memref<16x128xf32, #tpu.memory_space<vmem>>) attributes {dimension_semantics = [], scalar_prefetch = 0 : i64, scratch_operands = 0 : i64, tpu.core_type = #tpu.core_type<tc>} {
    %c0 = arith.constant 0 : index
    %c0_0 = arith.constant 0 : index
    %0 = vector.load %arg0[%c0, %c0_0] : memref<64x16xf32, #tpu.memory_space<vmem>>, vector<64x16xf32>
    %c0_1 = arith.constant 0 : index
    %c0_2 = arith.constant 0 : index
    %1 = vector.load %arg1[%c0_1, %c0_2] : memref<168x128xf32, #tpu.memory_space<vmem>>, vector<16x128xf32>
    %cst = arith.constant dense<0.000000e+00> : vector<64x128xf32>
    %2 = tpu.matmul %0, %1, %cst {dimension_numbers = #tpu.dot_dimension_numbers<[1], [0], [0], [1], [0, 0, 1, 1], [], []>} : vector<64x16xf32>, vector<16x128xf32>, vector<64x128xf32> -> vector<64x128xf32>
    %c48 = arith.constant 48 : index
    %c0_3 = arith.constant 0 : index
    %3 = vector.load %arg1[%c48, %c0_3] : memref<168x128xf32, #tpu.memory_space<vmem>>, vector<1x128xf32>
    %4 = vector.broadcast %3 : vector<1x128xf32> to vector<64x128xf32>
    %5 = arith.addf %2, %4 : vector<64x128xf32>
    %c16 = arith.constant 16 : index
    %c0_4 = arith.constant 0 : index
    %6 = vector.load %arg1[%c16, %c0_4] : memref<168x128xf32, #tpu.memory_space<vmem>>, vector<32x128xf32>
    %c56 = arith.constant 56 : index
    %c0_5 = arith.constant 0 : index
    %7 = vector.load %arg1[%c56, %c0_5] : memref<168x128xf32, #tpu.memory_space<vmem>>, vector<64x128xf32>
    %c120 = arith.constant 120 : index
    %c0_6 = arith.constant 0 : index
    %8 = vector.load %arg1[%c120, %c0_6] : memref<168x128xf32, #tpu.memory_space<vmem>>, vector<1x128xf32>
    %9 = vector.shape_cast %8 : vector<1x128xf32> to vector<1x128xf32>
    %10 = vector.broadcast %9 : vector<1x128xf32> to vector<8x128xf32>
    %11 = tpu.iota {dimensions = array<i32: 1>} : vector<8x128xi32>
    %c64_i32 = arith.constant 64 : i32
    %12 = vector.broadcast %c64_i32 : i32 to vector<8x128xi32>
    %13 = arith.cmpi sge, %11, %12 : vector<8x128xi32>
    %c96_i32 = arith.constant 96 : i32
    %14 = vector.broadcast %c96_i32 : i32 to vector<8x128xi32>
    %15 = arith.cmpi slt, %11, %14 : vector<8x128xi32>
    %16 = arith.andi %13, %15 : vector<8x128xi1>
    %cst_7 = arith.constant 0.000000e+00 : f32
    %17 = vector.broadcast %cst_7 : f32 to vector<8x32xf32>
    %cst_8 = arith.constant 0.000000e+00 : f32
    %18 = vector.broadcast %cst_8 : f32 to vector<8x32xf32>
    %cst_9 = arith.constant 0.000000e+00 : f32
    %19 = vector.broadcast %cst_9 : f32 to vector<8x32xf32>
    %cst_10 = arith.constant 0.000000e+00 : f32
    %20 = vector.broadcast %cst_10 : f32 to vector<8x32xf32>
    %21 = vector.extract_strided_slice %5 {offsets = [0, 0], sizes = [8, 128], strides = [1, 1]} : vector<64x128xf32> to vector<8x128xf32>
    %cst_11 = arith.constant dense<0.000000e+00> : vector<8x128xf32>
    %22 = tpu.matmul %17, %6, %cst_11 {dimension_numbers = #tpu.dot_dimension_numbers<[1], [0], [0], [1], [0, 0, 1, 1], [], []>} : vector<8x32xf32>, vector<32x128xf32>, vector<8x128xf32> -> vector<8x128xf32>
    %23 = arith.addf %21, %22 : vector<8x128xf32>
    %24 = math.tanh %23 : vector<8x128xf32>
    %25 = arith.negf %23 : vector<8x128xf32>
    %26 = math.exp %25 : vector<8x128xf32>
    %cst_12 = arith.constant 1.000000e+00 : f32
    %27 = vector.broadcast %cst_12 : f32 to vector<8x128xf32>
    %28 = arith.addf %27, %26 : vector<8x128xf32>
    %29 = arith.divf %27, %28 : vector<8x128xf32>
    %30 = arith.select %16, %24, %29 : vector<8x128xi1>, vector<8x128xf32>
    %31 = vector.extract_strided_slice %30 {offsets = [0, 0], sizes = [8, 32], strides = [1, 1]} : vector<8x128xf32> to vector<8x32xf32>
    %32 = vector.extract_strided_slice %30 {offsets = [0, 32], sizes = [8, 32], strides = [1, 1]} : vector<8x128xf32> to vector<8x32xf32>
    %33 = vector.extract_strided_slice %30 {offsets = [0, 64], sizes = [8, 32], strides = [1, 1]} : vector<8x128xf32> to vector<8x32xf32>
    %34 = vector.extract_strided_slice %30 {offsets = [0, 96], sizes = [8, 32], strides = [1, 1]} : vector<8x128xf32> to vector<8x32xf32>
    %35 = arith.mulf %32, %19 : vector<8x32xf32>
    %36 = arith.mulf %31, %33 : vector<8x32xf32>
    %37 = arith.addf %35, %36 : vector<8x32xf32>
    %38 = math.tanh %37 : vector<8x32xf32>
    %39 = arith.mulf %34, %38 : vector<8x32xf32>
    %40 = tpu.concatenate %39, %18 in 1 : vector<8x32xf32>, vector<8x32xf32> -> vector<8x64xf32>
    %cst_13 = arith.constant dense<0.000000e+00> : vector<8x128xf32>
    %41 = tpu.matmul %40, %7, %cst_13 {dimension_numbers = #tpu.dot_dimension_numbers<[1], [0], [0], [1], [0, 0, 1, 1], [], []>} : vector<8x64xf32>, vector<64x128xf32>, vector<8x128xf32> -> vector<8x128xf32>
    %42 = arith.addf %41, %10 : vector<8x128xf32>
    %43 = math.tanh %42 : vector<8x128xf32>
    %44 = arith.negf %42 : vector<8x128xf32>
    %45 = math.exp %44 : vector<8x128xf32>
    %cst_14 = arith.constant 1.000000e+00 : f32
    %46 = vector.broadcast %cst_14 : f32 to vector<8x128xf32>
    %47 = arith.addf %46, %45 : vector<8x128xf32>
    %48 = arith.divf %46, %47 : vector<8x128xf32>
    %49 = arith.select %16, %43, %48 : vector<8x128xi1>, vector<8x128xf32>
    %50 = vector.extract_strided_slice %49 {offsets = [0, 0], sizes = [8, 32], strides = [1, 1]} : vector<8x128xf32> to vector<8x32xf32>
    %51 = vector.extract_strided_slice %49 {offsets = [0, 32], sizes = [8, 32], strides = [1, 1]} : vector<8x128xf32> to vector<8x32xf32>
    %52 = vector.extract_strided_slice %49 {offsets = [0, 64], sizes = [8, 32], strides = [1, 1]} : vector<8x128xf32> to vector<8x32xf32>
    %53 = vector.extract_strided_slice %49 {offsets = [0, 96], sizes = [8, 32], strides = [1, 1]} : vector<8x128xf32> to vector<8x32xf32>
    %54 = arith.mulf %51, %20 : vector<8x32xf32>
    %55 = arith.mulf %50, %52 : vector<8x32xf32>
    %56 = arith.addf %54, %55 : vector<8x32xf32>
    %57 = math.tanh %56 : vector<8x32xf32>
    %58 = arith.mulf %53, %57 : vector<8x32xf32>
    %59 = vector.extract_strided_slice %5 {offsets = [8, 0], sizes = [8, 128], strides = [1, 1]} : vector<64x128xf32> to vector<8x128xf32>
    %cst_15 = arith.constant dense<0.000000e+00> : vector<8x128xf32>
    %60 = tpu.matmul %39, %6, %cst_15 {dimension_numbers = #tpu.dot_dimension_numbers<[1], [0], [0], [1], [0, 0, 1, 1], [], []>} : vector<8x32xf32>, vector<32x128xf32>, vector<8x128xf32> -> vector<8x128xf32>
    %61 = arith.addf %59, %60 : vector<8x128xf32>
    %62 = math.tanh %61 : vector<8x128xf32>
    %63 = arith.negf %61 : vector<8x128xf32>
    %64 = math.exp %63 : vector<8x128xf32>
    %cst_16 = arith.constant 1.000000e+00 : f32
    %65 = vector.broadcast %cst_16 : f32 to vector<8x128xf32>
    %66 = arith.addf %65, %64 : vector<8x128xf32>
    %67 = arith.divf %65, %66 : vector<8x128xf32>
    %68 = arith.select %16, %62, %67 : vector<8x128xi1>, vector<8x128xf32>
    %69 = vector.extract_strided_slice %68 {offsets = [0, 0], sizes = [8, 32], strides = [1, 1]} : vector<8x128xf32> to vector<8x32xf32>
    %70 = vector.extract_strided_slice %68 {offsets = [0, 32], sizes = [8, 32], strides = [1, 1]} : vector<8x128xf32> to vector<8x32xf32>
    %71 = vector.extract_strided_slice %68 {offsets = [0, 64], sizes = [8, 32], strides = [1, 1]} : vector<8x128xf32> to vector<8x32xf32>
    %72 = vector.extract_strided_slice %68 {offsets = [0, 96], sizes = [8, 32], strides = [1, 1]} : vector<8x128xf32> to vector<8x32xf32>
    %73 = arith.mulf %70, %37 : vector<8x32xf32>
    %74 = arith.mulf %69, %71 : vector<8x32xf32>
    %75 = arith.addf %73, %74 : vector<8x32xf32>
    %76 = math.tanh %75 : vector<8x32xf32>
    %77 = arith.mulf %72, %76 : vector<8x32xf32>
    %78 = tpu.concatenate %77, %58 in 1 : vector<8x32xf32>, vector<8x32xf32> -> vector<8x64xf32>
    %cst_17 = arith.constant dense<0.000000e+00> : vector<8x128xf32>
    %79 = tpu.matmul %78, %7, %cst_17 {dimension_numbers = #tpu.dot_dimension_numbers<[1], [0], [0], [1], [0, 0, 1, 1], [], []>} : vector<8x64xf32>, vector<64x128xf32>, vector<8x128xf32> -> vector<8x128xf32>
    %80 = arith.addf %79, %10 : vector<8x128xf32>
    %81 = math.tanh %80 : vector<8x128xf32>
    %82 = arith.negf %80 : vector<8x128xf32>
    %83 = math.exp %82 : vector<8x128xf32>
    %cst_18 = arith.constant 1.000000e+00 : f32
    %84 = vector.broadcast %cst_18 : f32 to vector<8x128xf32>
    %85 = arith.addf %84, %83 : vector<8x128xf32>
    %86 = arith.divf %84, %85 : vector<8x128xf32>
    %87 = arith.select %16, %81, %86 : vector<8x128xi1>, vector<8x128xf32>
    %88 = vector.extract_strided_slice %87 {offsets = [0, 0], sizes = [8, 32], strides = [1, 1]} : vector<8x128xf32> to vector<8x32xf32>
    %89 = vector.extract_strided_slice %87 {offsets = [0, 32], sizes = [8, 32], strides = [1, 1]} : vector<8x128xf32> to vector<8x32xf32>
    %90 = vector.extract_strided_slice %87 {offsets = [0, 64], sizes = [8, 32], strides = [1, 1]} : vector<8x128xf32> to vector<8x32xf32>
    %91 = vector.extract_strided_slice %87 {offsets = [0, 96], sizes = [8, 32], strides = [1, 1]} : vector<8x128xf32> to vector<8x32xf32>
    %92 = arith.mulf %89, %56 : vector<8x32xf32>
    %93 = arith.mulf %88, %90 : vector<8x32xf32>
    %94 = arith.addf %92, %93 : vector<8x32xf32>
    %95 = math.tanh %94 : vector<8x32xf32>
    %96 = arith.mulf %91, %95 : vector<8x32xf32>
    %97 = vector.extract_strided_slice %5 {offsets = [16, 0], sizes = [8, 128], strides = [1, 1]} : vector<64x128xf32> to vector<8x128xf32>
    %cst_19 = arith.constant dense<0.000000e+00> : vector<8x128xf32>
    %98 = tpu.matmul %77, %6, %cst_19 {dimension_numbers = #tpu.dot_dimension_numbers<[1], [0], [0], [1], [0, 0, 1, 1], [], []>} : vector<8x32xf32>, vector<32x128xf32>, vector<8x128xf32> -> vector<8x128xf32>
    %99 = arith.addf %97, %98 : vector<8x128xf32>
    %100 = math.tanh %99 : vector<8x128xf32>
    %101 = arith.negf %99 : vector<8x128xf32>
    %102 = math.exp %101 : vector<8x128xf32>
    %cst_20 = arith.constant 1.000000e+00 : f32
    %103 = vector.broadcast %cst_20 : f32 to vector<8x128xf32>
    %104 = arith.addf %103, %102 : vector<8x128xf32>
    %105 = arith.divf %103, %104 : vector<8x128xf32>
    %106 = arith.select %16, %100, %105 : vector<8x128xi1>, vector<8x128xf32>
    %107 = vector.extract_strided_slice %106 {offsets = [0, 0], sizes = [8, 32], strides = [1, 1]} : vector<8x128xf32> to vector<8x32xf32>
    %108 = vector.extract_strided_slice %106 {offsets = [0, 32], sizes = [8, 32], strides = [1, 1]} : vector<8x128xf32> to vector<8x32xf32>
    %109 = vector.extract_strided_slice %106 {offsets = [0, 64], sizes = [8, 32], strides = [1, 1]} : vector<8x128xf32> to vector<8x32xf32>
    %110 = vector.extract_strided_slice %106 {offsets = [0, 96], sizes = [8, 32], strides = [1, 1]} : vector<8x128xf32> to vector<8x32xf32>
    %111 = arith.mulf %108, %75 : vector<8x32xf32>
    %112 = arith.mulf %107, %109 : vector<8x32xf32>
    %113 = arith.addf %111, %112 : vector<8x32xf32>
    %114 = math.tanh %113 : vector<8x32xf32>
    %115 = arith.mulf %110, %114 : vector<8x32xf32>
    %116 = tpu.concatenate %115, %96 in 1 : vector<8x32xf32>, vector<8x32xf32> -> vector<8x64xf32>
    %cst_21 = arith.constant dense<0.000000e+00> : vector<8x128xf32>
    %117 = tpu.matmul %116, %7, %cst_21 {dimension_numbers = #tpu.dot_dimension_numbers<[1], [0], [0], [1], [0, 0, 1, 1], [], []>} : vector<8x64xf32>, vector<64x128xf32>, vector<8x128xf32> -> vector<8x128xf32>
    %118 = arith.addf %117, %10 : vector<8x128xf32>
    %119 = math.tanh %118 : vector<8x128xf32>
    %120 = arith.negf %118 : vector<8x128xf32>
    %121 = math.exp %120 : vector<8x128xf32>
    %cst_22 = arith.constant 1.000000e+00 : f32
    %122 = vector.broadcast %cst_22 : f32 to vector<8x128xf32>
    %123 = arith.addf %122, %121 : vector<8x128xf32>
    %124 = arith.divf %122, %123 : vector<8x128xf32>
    %125 = arith.select %16, %119, %124 : vector<8x128xi1>, vector<8x128xf32>
    %126 = vector.extract_strided_slice %125 {offsets = [0, 0], sizes = [8, 32], strides = [1, 1]} : vector<8x128xf32> to vector<8x32xf32>
    %127 = vector.extract_strided_slice %125 {offsets = [0, 32], sizes = [8, 32], strides = [1, 1]} : vector<8x128xf32> to vector<8x32xf32>
    %128 = vector.extract_strided_slice %125 {offsets = [0, 64], sizes = [8, 32], strides = [1, 1]} : vector<8x128xf32> to vector<8x32xf32>
    %129 = vector.extract_strided_slice %125 {offsets = [0, 96], sizes = [8, 32], strides = [1, 1]} : vector<8x128xf32> to vector<8x32xf32>
    %130 = arith.mulf %127, %94 : vector<8x32xf32>
    %131 = arith.mulf %126, %128 : vector<8x32xf32>
    %132 = arith.addf %130, %131 : vector<8x32xf32>
    %133 = math.tanh %132 : vector<8x32xf32>
    %134 = arith.mulf %129, %133 : vector<8x32xf32>
    %135 = vector.extract_strided_slice %5 {offsets = [24, 0], sizes = [8, 128], strides = [1, 1]} : vector<64x128xf32> to vector<8x128xf32>
    %cst_23 = arith.constant dense<0.000000e+00> : vector<8x128xf32>
    %136 = tpu.matmul %115, %6, %cst_23 {dimension_numbers = #tpu.dot_dimension_numbers<[1], [0], [0], [1], [0, 0, 1, 1], [], []>} : vector<8x32xf32>, vector<32x128xf32>, vector<8x128xf32> -> vector<8x128xf32>
    %137 = arith.addf %135, %136 : vector<8x128xf32>
    %138 = math.tanh %137 : vector<8x128xf32>
    %139 = arith.negf %137 : vector<8x128xf32>
    %140 = math.exp %139 : vector<8x128xf32>
    %cst_24 = arith.constant 1.000000e+00 : f32
    %141 = vector.broadcast %cst_24 : f32 to vector<8x128xf32>
    %142 = arith.addf %141, %140 : vector<8x128xf32>
    %143 = arith.divf %141, %142 : vector<8x128xf32>
    %144 = arith.select %16, %138, %143 : vector<8x128xi1>, vector<8x128xf32>
    %145 = vector.extract_strided_slice %144 {offsets = [0, 0], sizes = [8, 32], strides = [1, 1]} : vector<8x128xf32> to vector<8x32xf32>
    %146 = vector.extract_strided_slice %144 {offsets = [0, 32], sizes = [8, 32], strides = [1, 1]} : vector<8x128xf32> to vector<8x32xf32>
    %147 = vector.extract_strided_slice %144 {offsets = [0, 64], sizes = [8, 32], strides = [1, 1]} : vector<8x128xf32> to vector<8x32xf32>
    %148 = vector.extract_strided_slice %144 {offsets = [0, 96], sizes = [8, 32], strides = [1, 1]} : vector<8x128xf32> to vector<8x32xf32>
    %149 = arith.mulf %146, %113 : vector<8x32xf32>
    %150 = arith.mulf %145, %147 : vector<8x32xf32>
    %151 = arith.addf %149, %150 : vector<8x32xf32>
    %152 = math.tanh %151 : vector<8x32xf32>
    %153 = arith.mulf %148, %152 : vector<8x32xf32>
    %154 = tpu.concatenate %153, %134 in 1 : vector<8x32xf32>, vector<8x32xf32> -> vector<8x64xf32>
    %cst_25 = arith.constant dense<0.000000e+00> : vector<8x128xf32>
    %155 = tpu.matmul %154, %7, %cst_25 {dimension_numbers = #tpu.dot_dimension_numbers<[1], [0], [0], [1], [0, 0, 1, 1], [], []>} : vector<8x64xf32>, vector<64x128xf32>, vector<8x128xf32> -> vector<8x128xf32>
    %156 = arith.addf %155, %10 : vector<8x128xf32>
    %157 = math.tanh %156 : vector<8x128xf32>
    %158 = arith.negf %156 : vector<8x128xf32>
    %159 = math.exp %158 : vector<8x128xf32>
    %cst_26 = arith.constant 1.000000e+00 : f32
    %160 = vector.broadcast %cst_26 : f32 to vector<8x128xf32>
    %161 = arith.addf %160, %159 : vector<8x128xf32>
    %162 = arith.divf %160, %161 : vector<8x128xf32>
    %163 = arith.select %16, %157, %162 : vector<8x128xi1>, vector<8x128xf32>
    %164 = vector.extract_strided_slice %163 {offsets = [0, 0], sizes = [8, 32], strides = [1, 1]} : vector<8x128xf32> to vector<8x32xf32>
    %165 = vector.extract_strided_slice %163 {offsets = [0, 32], sizes = [8, 32], strides = [1, 1]} : vector<8x128xf32> to vector<8x32xf32>
    %166 = vector.extract_strided_slice %163 {offsets = [0, 64], sizes = [8, 32], strides = [1, 1]} : vector<8x128xf32> to vector<8x32xf32>
    %167 = vector.extract_strided_slice %163 {offsets = [0, 96], sizes = [8, 32], strides = [1, 1]} : vector<8x128xf32> to vector<8x32xf32>
    %168 = arith.mulf %165, %132 : vector<8x32xf32>
    %169 = arith.mulf %164, %166 : vector<8x32xf32>
    %170 = arith.addf %168, %169 : vector<8x32xf32>
    %171 = math.tanh %170 : vector<8x32xf32>
    %172 = arith.mulf %167, %171 : vector<8x32xf32>
    %173 = vector.extract_strided_slice %5 {offsets = [32, 0], sizes = [8, 128], strides = [1, 1]} : vector<64x128xf32> to vector<8x128xf32>
    %cst_27 = arith.constant dense<0.000000e+00> : vector<8x128xf32>
    %174 = tpu.matmul %153, %6, %cst_27 {dimension_numbers = #tpu.dot_dimension_numbers<[1], [0], [0], [1], [0, 0, 1, 1], [], []>} : vector<8x32xf32>, vector<32x128xf32>, vector<8x128xf32> -> vector<8x128xf32>
    %175 = arith.addf %173, %174 : vector<8x128xf32>
    %176 = math.tanh %175 : vector<8x128xf32>
    %177 = arith.negf %175 : vector<8x128xf32>
    %178 = math.exp %177 : vector<8x128xf32>
    %cst_28 = arith.constant 1.000000e+00 : f32
    %179 = vector.broadcast %cst_28 : f32 to vector<8x128xf32>
    %180 = arith.addf %179, %178 : vector<8x128xf32>
    %181 = arith.divf %179, %180 : vector<8x128xf32>
    %182 = arith.select %16, %176, %181 : vector<8x128xi1>, vector<8x128xf32>
    %183 = vector.extract_strided_slice %182 {offsets = [0, 0], sizes = [8, 32], strides = [1, 1]} : vector<8x128xf32> to vector<8x32xf32>
    %184 = vector.extract_strided_slice %182 {offsets = [0, 32], sizes = [8, 32], strides = [1, 1]} : vector<8x128xf32> to vector<8x32xf32>
    %185 = vector.extract_strided_slice %182 {offsets = [0, 64], sizes = [8, 32], strides = [1, 1]} : vector<8x128xf32> to vector<8x32xf32>
    %186 = vector.extract_strided_slice %182 {offsets = [0, 96], sizes = [8, 32], strides = [1, 1]} : vector<8x128xf32> to vector<8x32xf32>
    %187 = arith.mulf %184, %151 : vector<8x32xf32>
    %188 = arith.mulf %183, %185 : vector<8x32xf32>
    %189 = arith.addf %187, %188 : vector<8x32xf32>
    %190 = math.tanh %189 : vector<8x32xf32>
    %191 = arith.mulf %186, %190 : vector<8x32xf32>
    %192 = tpu.concatenate %191, %172 in 1 : vector<8x32xf32>, vector<8x32xf32> -> vector<8x64xf32>
    %cst_29 = arith.constant dense<0.000000e+00> : vector<8x128xf32>
    %193 = tpu.matmul %192, %7, %cst_29 {dimension_numbers = #tpu.dot_dimension_numbers<[1], [0], [0], [1], [0, 0, 1, 1], [], []>} : vector<8x64xf32>, vector<64x128xf32>, vector<8x128xf32> -> vector<8x128xf32>
    %194 = arith.addf %193, %10 : vector<8x128xf32>
    %195 = math.tanh %194 : vector<8x128xf32>
    %196 = arith.negf %194 : vector<8x128xf32>
    %197 = math.exp %196 : vector<8x128xf32>
    %cst_30 = arith.constant 1.000000e+00 : f32
    %198 = vector.broadcast %cst_30 : f32 to vector<8x128xf32>
    %199 = arith.addf %198, %197 : vector<8x128xf32>
    %200 = arith.divf %198, %199 : vector<8x128xf32>
    %201 = arith.select %16, %195, %200 : vector<8x128xi1>, vector<8x128xf32>
    %202 = vector.extract_strided_slice %201 {offsets = [0, 0], sizes = [8, 32], strides = [1, 1]} : vector<8x128xf32> to vector<8x32xf32>
    %203 = vector.extract_strided_slice %201 {offsets = [0, 32], sizes = [8, 32], strides = [1, 1]} : vector<8x128xf32> to vector<8x32xf32>
    %204 = vector.extract_strided_slice %201 {offsets = [0, 64], sizes = [8, 32], strides = [1, 1]} : vector<8x128xf32> to vector<8x32xf32>
    %205 = vector.extract_strided_slice %201 {offsets = [0, 96], sizes = [8, 32], strides = [1, 1]} : vector<8x128xf32> to vector<8x32xf32>
    %206 = arith.mulf %203, %170 : vector<8x32xf32>
    %207 = arith.mulf %202, %204 : vector<8x32xf32>
    %208 = arith.addf %206, %207 : vector<8x32xf32>
    %209 = math.tanh %208 : vector<8x32xf32>
    %210 = arith.mulf %205, %209 : vector<8x32xf32>
    %211 = vector.extract_strided_slice %5 {offsets = [40, 0], sizes = [8, 128], strides = [1, 1]} : vector<64x128xf32> to vector<8x128xf32>
    %cst_31 = arith.constant dense<0.000000e+00> : vector<8x128xf32>
    %212 = tpu.matmul %191, %6, %cst_31 {dimension_numbers = #tpu.dot_dimension_numbers<[1], [0], [0], [1], [0, 0, 1, 1], [], []>} : vector<8x32xf32>, vector<32x128xf32>, vector<8x128xf32> -> vector<8x128xf32>
    %213 = arith.addf %211, %212 : vector<8x128xf32>
    %214 = math.tanh %213 : vector<8x128xf32>
    %215 = arith.negf %213 : vector<8x128xf32>
    %216 = math.exp %215 : vector<8x128xf32>
    %cst_32 = arith.constant 1.000000e+00 : f32
    %217 = vector.broadcast %cst_32 : f32 to vector<8x128xf32>
    %218 = arith.addf %217, %216 : vector<8x128xf32>
    %219 = arith.divf %217, %218 : vector<8x128xf32>
    %220 = arith.select %16, %214, %219 : vector<8x128xi1>, vector<8x128xf32>
    %221 = vector.extract_strided_slice %220 {offsets = [0, 0], sizes = [8, 32], strides = [1, 1]} : vector<8x128xf32> to vector<8x32xf32>
    %222 = vector.extract_strided_slice %220 {offsets = [0, 32], sizes = [8, 32], strides = [1, 1]} : vector<8x128xf32> to vector<8x32xf32>
    %223 = vector.extract_strided_slice %220 {offsets = [0, 64], sizes = [8, 32], strides = [1, 1]} : vector<8x128xf32> to vector<8x32xf32>
    %224 = vector.extract_strided_slice %220 {offsets = [0, 96], sizes = [8, 32], strides = [1, 1]} : vector<8x128xf32> to vector<8x32xf32>
    %225 = arith.mulf %222, %189 : vector<8x32xf32>
    %226 = arith.mulf %221, %223 : vector<8x32xf32>
    %227 = arith.addf %225, %226 : vector<8x32xf32>
    %228 = math.tanh %227 : vector<8x32xf32>
    %229 = arith.mulf %224, %228 : vector<8x32xf32>
    %230 = tpu.concatenate %229, %210 in 1 : vector<8x32xf32>, vector<8x32xf32> -> vector<8x64xf32>
    %cst_33 = arith.constant dense<0.000000e+00> : vector<8x128xf32>
    %231 = tpu.matmul %230, %7, %cst_33 {dimension_numbers = #tpu.dot_dimension_numbers<[1], [0], [0], [1], [0, 0, 1, 1], [], []>} : vector<8x64xf32>, vector<64x128xf32>, vector<8x128xf32> -> vector<8x128xf32>
    %232 = arith.addf %231, %10 : vector<8x128xf32>
    %233 = math.tanh %232 : vector<8x128xf32>
    %234 = arith.negf %232 : vector<8x128xf32>
    %235 = math.exp %234 : vector<8x128xf32>
    %cst_34 = arith.constant 1.000000e+00 : f32
    %236 = vector.broadcast %cst_34 : f32 to vector<8x128xf32>
    %237 = arith.addf %236, %235 : vector<8x128xf32>
    %238 = arith.divf %236, %237 : vector<8x128xf32>
    %239 = arith.select %16, %233, %238 : vector<8x128xi1>, vector<8x128xf32>
    %240 = vector.extract_strided_slice %239 {offsets = [0, 0], sizes = [8, 32], strides = [1, 1]} : vector<8x128xf32> to vector<8x32xf32>
    %241 = vector.extract_strided_slice %239 {offsets = [0, 32], sizes = [8, 32], strides = [1, 1]} : vector<8x128xf32> to vector<8x32xf32>
    %242 = vector.extract_strided_slice %239 {offsets = [0, 64], sizes = [8, 32], strides = [1, 1]} : vector<8x128xf32> to vector<8x32xf32>
    %243 = vector.extract_strided_slice %239 {offsets = [0, 96], sizes = [8, 32], strides = [1, 1]} : vector<8x128xf32> to vector<8x32xf32>
    %244 = arith.mulf %241, %208 : vector<8x32xf32>
    %245 = arith.mulf %240, %242 : vector<8x32xf32>
    %246 = arith.addf %244, %245 : vector<8x32xf32>
    %247 = math.tanh %246 : vector<8x32xf32>
    %248 = arith.mulf %243, %247 : vector<8x32xf32>
    %249 = vector.extract_strided_slice %5 {offsets = [48, 0], sizes = [8, 128], strides = [1, 1]} : vector<64x128xf32> to vector<8x128xf32>
    %cst_35 = arith.constant dense<0.000000e+00> : vector<8x128xf32>
    %250 = tpu.matmul %229, %6, %cst_35 {dimension_numbers = #tpu.dot_dimension_numbers<[1], [0], [0], [1], [0, 0, 1, 1], [], []>} : vector<8x32xf32>, vector<32x128xf32>, vector<8x128xf32> -> vector<8x128xf32>
    %251 = arith.addf %249, %250 : vector<8x128xf32>
    %252 = math.tanh %251 : vector<8x128xf32>
    %253 = arith.negf %251 : vector<8x128xf32>
    %254 = math.exp %253 : vector<8x128xf32>
    %cst_36 = arith.constant 1.000000e+00 : f32
    %255 = vector.broadcast %cst_36 : f32 to vector<8x128xf32>
    %256 = arith.addf %255, %254 : vector<8x128xf32>
    %257 = arith.divf %255, %256 : vector<8x128xf32>
    %258 = arith.select %16, %252, %257 : vector<8x128xi1>, vector<8x128xf32>
    %259 = vector.extract_strided_slice %258 {offsets = [0, 0], sizes = [8, 32], strides = [1, 1]} : vector<8x128xf32> to vector<8x32xf32>
    %260 = vector.extract_strided_slice %258 {offsets = [0, 32], sizes = [8, 32], strides = [1, 1]} : vector<8x128xf32> to vector<8x32xf32>
    %261 = vector.extract_strided_slice %258 {offsets = [0, 64], sizes = [8, 32], strides = [1, 1]} : vector<8x128xf32> to vector<8x32xf32>
    %262 = vector.extract_strided_slice %258 {offsets = [0, 96], sizes = [8, 32], strides = [1, 1]} : vector<8x128xf32> to vector<8x32xf32>
    %263 = arith.mulf %260, %227 : vector<8x32xf32>
    %264 = arith.mulf %259, %261 : vector<8x32xf32>
    %265 = arith.addf %263, %264 : vector<8x32xf32>
    %266 = math.tanh %265 : vector<8x32xf32>
    %267 = arith.mulf %262, %266 : vector<8x32xf32>
    %268 = tpu.concatenate %267, %248 in 1 : vector<8x32xf32>, vector<8x32xf32> -> vector<8x64xf32>
    %cst_37 = arith.constant dense<0.000000e+00> : vector<8x128xf32>
    %269 = tpu.matmul %268, %7, %cst_37 {dimension_numbers = #tpu.dot_dimension_numbers<[1], [0], [0], [1], [0, 0, 1, 1], [], []>} : vector<8x64xf32>, vector<64x128xf32>, vector<8x128xf32> -> vector<8x128xf32>
    %270 = arith.addf %269, %10 : vector<8x128xf32>
    %271 = math.tanh %270 : vector<8x128xf32>
    %272 = arith.negf %270 : vector<8x128xf32>
    %273 = math.exp %272 : vector<8x128xf32>
    %cst_38 = arith.constant 1.000000e+00 : f32
    %274 = vector.broadcast %cst_38 : f32 to vector<8x128xf32>
    %275 = arith.addf %274, %273 : vector<8x128xf32>
    %276 = arith.divf %274, %275 : vector<8x128xf32>
    %277 = arith.select %16, %271, %276 : vector<8x128xi1>, vector<8x128xf32>
    %278 = vector.extract_strided_slice %277 {offsets = [0, 0], sizes = [8, 32], strides = [1, 1]} : vector<8x128xf32> to vector<8x32xf32>
    %279 = vector.extract_strided_slice %277 {offsets = [0, 32], sizes = [8, 32], strides = [1, 1]} : vector<8x128xf32> to vector<8x32xf32>
    %280 = vector.extract_strided_slice %277 {offsets = [0, 64], sizes = [8, 32], strides = [1, 1]} : vector<8x128xf32> to vector<8x32xf32>
    %281 = vector.extract_strided_slice %277 {offsets = [0, 96], sizes = [8, 32], strides = [1, 1]} : vector<8x128xf32> to vector<8x32xf32>
    %282 = arith.mulf %279, %246 : vector<8x32xf32>
    %283 = arith.mulf %278, %280 : vector<8x32xf32>
    %284 = arith.addf %282, %283 : vector<8x32xf32>
    %285 = math.tanh %284 : vector<8x32xf32>
    %286 = arith.mulf %281, %285 : vector<8x32xf32>
    %287 = vector.extract_strided_slice %5 {offsets = [56, 0], sizes = [8, 128], strides = [1, 1]} : vector<64x128xf32> to vector<8x128xf32>
    %cst_39 = arith.constant dense<0.000000e+00> : vector<8x128xf32>
    %288 = tpu.matmul %267, %6, %cst_39 {dimension_numbers = #tpu.dot_dimension_numbers<[1], [0], [0], [1], [0, 0, 1, 1], [], []>} : vector<8x32xf32>, vector<32x128xf32>, vector<8x128xf32> -> vector<8x128xf32>
    %289 = arith.addf %287, %288 : vector<8x128xf32>
    %290 = math.tanh %289 : vector<8x128xf32>
    %291 = arith.negf %289 : vector<8x128xf32>
    %292 = math.exp %291 : vector<8x128xf32>
    %cst_40 = arith.constant 1.000000e+00 : f32
    %293 = vector.broadcast %cst_40 : f32 to vector<8x128xf32>
    %294 = arith.addf %293, %292 : vector<8x128xf32>
    %295 = arith.divf %293, %294 : vector<8x128xf32>
    %296 = arith.select %16, %290, %295 : vector<8x128xi1>, vector<8x128xf32>
    %297 = vector.extract_strided_slice %296 {offsets = [0, 0], sizes = [8, 32], strides = [1, 1]} : vector<8x128xf32> to vector<8x32xf32>
    %298 = vector.extract_strided_slice %296 {offsets = [0, 32], sizes = [8, 32], strides = [1, 1]} : vector<8x128xf32> to vector<8x32xf32>
    %299 = vector.extract_strided_slice %296 {offsets = [0, 64], sizes = [8, 32], strides = [1, 1]} : vector<8x128xf32> to vector<8x32xf32>
    %300 = vector.extract_strided_slice %296 {offsets = [0, 96], sizes = [8, 32], strides = [1, 1]} : vector<8x128xf32> to vector<8x32xf32>
    %301 = arith.mulf %298, %265 : vector<8x32xf32>
    %302 = arith.mulf %297, %299 : vector<8x32xf32>
    %303 = arith.addf %301, %302 : vector<8x32xf32>
    %304 = math.tanh %303 : vector<8x32xf32>
    %305 = arith.mulf %300, %304 : vector<8x32xf32>
    %306 = tpu.concatenate %305, %286 in 1 : vector<8x32xf32>, vector<8x32xf32> -> vector<8x64xf32>
    %cst_41 = arith.constant dense<0.000000e+00> : vector<8x128xf32>
    %307 = tpu.matmul %306, %7, %cst_41 {dimension_numbers = #tpu.dot_dimension_numbers<[1], [0], [0], [1], [0, 0, 1, 1], [], []>} : vector<8x64xf32>, vector<64x128xf32>, vector<8x128xf32> -> vector<8x128xf32>
    %308 = arith.addf %307, %10 : vector<8x128xf32>
    %309 = math.tanh %308 : vector<8x128xf32>
    %310 = arith.negf %308 : vector<8x128xf32>
    %311 = math.exp %310 : vector<8x128xf32>
    %cst_42 = arith.constant 1.000000e+00 : f32
    %312 = vector.broadcast %cst_42 : f32 to vector<8x128xf32>
    %313 = arith.addf %312, %311 : vector<8x128xf32>
    %314 = arith.divf %312, %313 : vector<8x128xf32>
    %315 = arith.select %16, %309, %314 : vector<8x128xi1>, vector<8x128xf32>
    %316 = vector.extract_strided_slice %315 {offsets = [0, 0], sizes = [8, 32], strides = [1, 1]} : vector<8x128xf32> to vector<8x32xf32>
    %317 = vector.extract_strided_slice %315 {offsets = [0, 32], sizes = [8, 32], strides = [1, 1]} : vector<8x128xf32> to vector<8x32xf32>
    %318 = vector.extract_strided_slice %315 {offsets = [0, 64], sizes = [8, 32], strides = [1, 1]} : vector<8x128xf32> to vector<8x32xf32>
    %319 = vector.extract_strided_slice %315 {offsets = [0, 96], sizes = [8, 32], strides = [1, 1]} : vector<8x128xf32> to vector<8x32xf32>
    %320 = arith.mulf %317, %284 : vector<8x32xf32>
    %321 = arith.mulf %316, %318 : vector<8x32xf32>
    %322 = arith.addf %320, %321 : vector<8x32xf32>
    %323 = math.tanh %322 : vector<8x32xf32>
    %324 = arith.mulf %319, %323 : vector<8x32xf32>
    %c128 = arith.constant 128 : index
    %c0_43 = arith.constant 0 : index
    %325 = vector.load %arg1[%c128, %c0_43] : memref<168x128xf32, #tpu.memory_space<vmem>>, vector<32x128xf32>
    %cst_44 = arith.constant dense<0.000000e+00> : vector<8x128xf32>
    %326 = tpu.matmul %324, %325, %cst_44 {dimension_numbers = #tpu.dot_dimension_numbers<[1], [0], [0], [1], [0, 0, 1, 1], [], []>} : vector<8x32xf32>, vector<32x128xf32>, vector<8x128xf32> -> vector<8x128xf32>
    %c160 = arith.constant 160 : index
    %c0_45 = arith.constant 0 : index
    %327 = vector.load %arg1[%c160, %c0_45] : memref<168x128xf32, #tpu.memory_space<vmem>>, vector<1x128xf32>
    %328 = vector.broadcast %327 : vector<1x128xf32> to vector<8x128xf32>
    %329 = arith.addf %326, %328 : vector<8x128xf32>
    %330 = tpu.concatenate %305, %303, %324, %322 in 1 : vector<8x32xf32>, vector<8x32xf32>, vector<8x32xf32>, vector<8x32xf32> -> vector<8x128xf32>
    %c0_46 = arith.constant 0 : index
    %c0_47 = arith.constant 0 : index
    %331 = vector.load %arg2[%c0_46, %c0_47] : memref<16x128xf32, #tpu.memory_space<vmem>>, vector<8x128xf32>
    tpu.vector_store %arg2[%c0_46, %c0_47], %329 {strides = array<i32>} : memref<16x128xf32, #tpu.memory_space<vmem>>, vector<8x128xf32>,
    %c8 = arith.constant 8 : index
    %c0_48 = arith.constant 0 : index
    %332 = vector.load %arg2[%c8, %c0_48] : memref<16x128xf32, #tpu.memory_space<vmem>>, vector<8x128xf32>
    tpu.vector_store %arg2[%c8, %c0_48], %330 {strides = array<i32>} : memref<16x128xf32, #tpu.memory_space<vmem>>, vector<8x128xf32>,
    return
  }
}

</mosaic_0001>

<llo_original>
// kernel: lstm_model_forward.1
$region0: #{lstm_model_forward.1}
  #allocation0 [shape = 'u32[]', space=smem, size = 0x4, offset = 0x4, fixed_abs, tag = 'smem constant byte address 0x4 - core index']
  #allocation1 [shape = 'u32[144,128]{1,0:T(1,128)}', space=vmem, size = 0x12000, scoped, tag = 'internal scratch']
  %s0 = inlined_call_operand.vmem [shape: f32[64,16], index: 0, kind: input, shape index: {}]
  %s1 = inlined_call_operand.hbm [shape: f32[168,128], index: 1, kind: input, shape index: {}]
  %s2 = inlined_call_operand.vmem [shape: f32[16,128], index: 2, kind: output, shape index: {}]
  %s3 = sld [smem:[#allocation0]]
  $region22: #{lstm_model_forward.1} parent=0
    _
  %s5 = ssub.s32 1, %s3
  %s6 = scalar_select 0, %s5, %s3
  $region1: #{lstm_model_forward.1} parent=0
    #allocation2 [shape = 'u8[86016]{0}', space=vmem, size = 0x15000, scoped, tag = 'input window, operand 1, single buffered']
    #allocation3 [shape = 's32[1]{0}', space=sflag, size = 0x4, scoped, tag = 'scoped memory for lstm_model_forward.1']
    %7 = vsyncpa [#allocation3], 0
    // Predicated region
    $region2: #{lstm_model_forward.1} parent=1 // pred_check
      _
    $region3: #{lstm_model_forward.1} parent=1 // pred_check_branch
      %9 = sbr.rel (0) target = $region5
    $region4: #{lstm_model_forward.1} parent=1 // pred_region
      _
    $region5: #{lstm_model_forward.1} parent=1 // pred_fallthru
      _
    // Predicated region
    $region6: #{lstm_model_forward.1} parent=1 // pred_check
      _
    $region7: #{lstm_model_forward.1} parent=1 // pred_check_branch
      %11 = sbr.rel (0) target = $region9
    $region8: #{lstm_model_forward.1} parent=1 // pred_region
      %s13 = ssub.s32 2688, 2688
      %14 = vsyncadd [#allocation3], %s13
      %s15 = sshll.u32 [#allocation2], 4
      %s16 = int_to_ptr.vmem [resolvable:$true] %s15
      %21 = dma.hbm_to_vmem [thread:$0]  %s1, 2688, %s16, [#allocation3], 128, 128, 8
    $region9: #{lstm_model_forward.1} parent=1 // pred_fallthru
      _
    // Predicated region
    $region10: #{lstm_model_forward.1} parent=1 // pred_check
      _
    $region11: #{lstm_model_forward.1} parent=1 // pred_check_branch
      %23 = sbr.rel (0) target = $region13
    $region12: #{lstm_model_forward.1} parent=1 // pred_region
      %24 = dma.done [#allocation3], 2688
    $region13: #{lstm_model_forward.1} parent=1 // pred_fallthru
      _
    %v25 = vld [vmem:[%s0] sm:$0xff]
    %v26 = vld [vmem:[%s0 + $0x8] sm:$0xff]
    %v27 = vld [vmem:[%s0 + $0x10] sm:$0xff]
    %v28 = vld [vmem:[%s0 + $0x18] sm:$0xff]
    %v29 = vld [vmem:[%s0 + $0x20] sm:$0xff]
    %v30 = vld [vmem:[%s0 + $0x28] sm:$0xff]
    %v31 = vld [vmem:[%s0 + $0x30] sm:$0xff]
    %v32 = vld [vmem:[%s0 + $0x38] sm:$0xff]
    %v33 = vld [vmem:[#allocation2] sm:$0xff]
    %v34 = vld [vmem:[#allocation2 + $0x8] sm:$0xff]
    %v35 = vld [vmem:[#allocation2 + $0x30] sm:$0x1]
    %v36 = vlaneseq
    %v37 = vshrl.u32 %v36, 7
    %v38 = vsub.s32 0, %v37
    %v39 = vrot.slane %v35, %v38
    %vm40 = vcmask 130048
    %v42 = vsel %vm40, %v25, 0
    %v45 = vsel %vm40, %v26, 0
    %v48 = vsel %vm40, %v27, 0
    %v51 = vsel %vm40, %v28, 0
    %v54 = vsel %vm40, %v29, 0
    %v57 = vsel %vm40, %v30, 0
    %v60 = vsel %vm40, %v31, 0
    %v63 = vsel %vm40, %v32, 0
    %65 = vmatprep.subr.mxu0 0.0
    %66 = vmatpush1.msra.mxu0 0.0
    %67 = vmatprep.subr.mxu0 0.0
    %68 = vmatpush1.msra.mxu0 0.0
    %69 = vmatprep.subr.mxu0 0.0
    %70 = vmatpush1.msra.mxu0 0.0
    %71 = vmatprep.subr.mxu0 0.0
    %72 = vmatpush1.msra.mxu0 0.0
    %73 = vmatprep.subr.mxu0 0.0
    %74 = vmatpush1.msra.mxu0 0.0
    %75 = vmatprep.subr.mxu0 0.0
    %76 = vmatpush1.msra.mxu0 0.0
    %77 = vmatprep.subr.mxu0 0.0
    %78 = vmatpush1.msra.mxu0 0.0
    %79 = vmatprep.subr.mxu0 0.0
    %80 = vmatpush1.msra.mxu0 0.0
    %81 = vmatprep.subr.mxu0 0.0
    %82 = vmatpush1.msra.mxu0 0.0
    %83 = vmatprep.subr.mxu0 0.0
    %84 = vmatpush1.msra.mxu0 0.0
    %85 = vmatprep.subr.mxu0 0.0
    %86 = vmatpush1.msra.mxu0 0.0
    %87 = vmatprep.subr.mxu0 0.0
    %88 = vmatpush1.msra.mxu0 0.0
    %89 = vmatprep.subr.mxu0 0.0
    %90 = vmatpush1.msra.mxu0 0.0
    %91 = vmatprep.subr.mxu0 0.0
    %92 = vmatpush1.msra.mxu0 0.0
    %93 = vmatprep.subr.mxu0 0.0
    %94 = vmatpush1.msra.mxu0 %v34
    %95 = vmatprep.subr.mxu0 0.0
    %96 = vmatpush1.msra.mxu0 %v33
    %97 = vmatprep.subr.mxu0 0.0
    %98 = vmatpush2.msra.mxu0 0.0
    %99 = vmatprep.subr.mxu0 0.0
    %100 = vmatpush2.msra.mxu0 0.0
    %101 = vmatprep.subr.mxu0 0.0
    %102 = vmatpush2.msra.mxu0 0.0
    %103 = vmatprep.subr.mxu0 0.0
    %104 = vmatpush2.msra.mxu0 0.0
    %105 = vmatprep.subr.mxu0 0.0
    %106 = vmatpush2.msra.mxu0 0.0
    %107 = vmatprep.subr.mxu0 0.0
    %108 = vmatpush2.msra.mxu0 0.0
    %109 = vmatprep.subr.mxu0 0.0
    %110 = vmatpush2.msra.mxu0 0.0
    %111 = vmatprep.subr.mxu0 0.0
    %112 = vmatpush2.msra.mxu0 0.0
    %113 = vmatprep.subr.mxu0 0.0
    %114 = vmatpush2.msra.mxu0 0.0
    %115 = vmatprep.subr.mxu0 0.0
    %116 = vmatpush2.msra.mxu0 0.0
    %117 = vmatprep.subr.mxu0 0.0
    %118 = vmatpush2.msra.mxu0 0.0
    %119 = vmatprep.subr.mxu0 0.0
    %120 = vmatpush2.msra.mxu0 0.0
    %121 = vmatprep.subr.mxu0 0.0
    %122 = vmatpush2.msra.mxu0 0.0
    %123 = vmatprep.subr.mxu0 0.0
    %124 = vmatpush2.msra.mxu0 0.0
    %125 = vmatprep.subr.mxu0 0.0
    %126 = vmatpush2.msra.mxu0 0.0
    %127 = vmatprep.subr.mxu0 0.0
    %128 = vmatpush2.msra.mxu0 0.0
    %129 = vmatprep.mubr.f32.mxu0 0.0
    %130 = vmatmul.mubr.f32.gmra.mxu0 %v42
    %v131 = vpop.f32.mrf.mxu0
    %v132 = vadd.f32 %v39, %v131
    %v133 = vpop.f32.mrf.mxu0
    %134 = vmatprep.mubr.f32.mxu0 0.0
    %135 = vmatmul.mubr.f32.gmra.mxu0 %v45
    %v136 = vpop.f32.mrf.mxu0
    %v137 = vadd.f32 %v39, %v136
    %v138 = vpop.f32.mrf.mxu0
    %139 = vmatprep.mubr.f32.mxu0 0.0
    %140 = vmatmul.mubr.f32.gmra.mxu0 %v48
    %v141 = vpop.f32.mrf.mxu0
    %v142 = vadd.f32 %v39, %v141
    %v143 = vpop.f32.mrf.mxu0
    %144 = vmatprep.mubr.f32.mxu0 0.0
    %145 = vmatmul.mubr.f32.gmra.mxu0 %v51
    %v146 = vpop.f32.mrf.mxu0
    %v147 = vadd.f32 %v39, %v146
    %v148 = vpop.f32.mrf.mxu0
    %149 = vmatprep.mubr.f32.mxu0 0.0
    %150 = vmatmul.mubr.f32.gmra.mxu0 %v54
    %v151 = vpop.f32.mrf.mxu0
    %v152 = vadd.f32 %v39, %v151
    %v153 = vpop.f32.mrf.mxu0
    %154 = vmatprep.mubr.f32.mxu0 0.0
    %155 = vmatmul.mubr.f32.gmra.mxu0 %v57
    %v156 = vpop.f32.mrf.mxu0
    %v157 = vadd.f32 %v39, %v156
    %v158 = vpop.f32.mrf.mxu0
    %159 = vmatprep.mubr.f32.mxu0 0.0
    %160 = vmatmul.mubr.f32.gmra.mxu0 %v60
    %v161 = vpop.f32.mrf.mxu0
    %v162 = vadd.f32 %v39, %v161
    %v163 = vpop.f32.mrf.mxu0
    %164 = vmatprep.mubr.f32.mxu0 0.0
    %165 = vmatmul.mubr.f32.gmra.mxu0 %v63
    %v166 = vpop.f32.mrf.mxu0
    %v167 = vadd.f32 %v39, %v166
    %v168 = vpop.f32.mrf.mxu0
    %169 = vdwg.mxu0
    %v170 = vld [vmem:[#allocation2 + $0x10] sm:$0xff]
    %v171 = vld [vmem:[#allocation2 + $0x18] sm:$0xff]
    %v172 = vld [vmem:[#allocation2 + $0x20] sm:$0xff]
    %v173 = vld [vmem:[#allocation2 + $0x28] sm:$0xff]
    %v174 = vld [vmem:[#allocation2 + $0x38] sm:$0xff]
    %v175 = vld [vmem:[#allocation2 + $0x40] sm:$0xff]
    %v176 = vld [vmem:[#allocation2 + $0x48] sm:$0xff]
    %v177 = vld [vmem:[#allocation2 + $0x50] sm:$0xff]
    %v178 = vld [vmem:[#allocation2 + $0x58] sm:$0xff]
    %v179 = vld [vmem:[#allocation2 + $0x60] sm:$0xff]
    %v180 = vld [vmem:[#allocation2 + $0x68] sm:$0xff]
    %v181 = vld [vmem:[#allocation2 + $0x70] sm:$0xff]
    %v182 = vld [vmem:[#allocation2 + $0x78] sm:$0x1]
    %v183 = vlaneseq
    %v184 = vshrl.u32 %v183, 7
    %v185 = vsub.s32 0, %v184
    %v186 = vrot.slane %v182, %v185
    %v187 = vlaneseq
    %v188 = vand.u32 %v187, 127
    %vm189 = vcmp.ge.s32.totalorder %v188, 64
    %vm190 = vcmp.lt.s32.totalorder %v188, 96
    %vm191 = vmand %vm189, %vm190
    %vm192 = vcmask 261120
    %v194 = vsel %vm192, 0.0, 0
    %196 = vmatprep.subr.mxu0 0.0
    %197 = vmatpush1.msra.mxu0 0.0
    %198 = vmatprep.subr.mxu0 0.0
    %199 = vmatpush1.msra.mxu0 0.0
    %200 = vmatprep.subr.mxu0 0.0
    %201 = vmatpush1.msra.mxu0 0.0
    %202 = vmatprep.subr.mxu0 0.0
    %203 = vmatpush1.msra.mxu0 0.0
    %204 = vmatprep.subr.mxu0 0.0
    %205 = vmatpush1.msra.mxu0 0.0
    %206 = vmatprep.subr.mxu0 0.0
    %207 = vmatpush1.msra.mxu0 0.0
    %208 = vmatprep.subr.mxu0 0.0
    %209 = vmatpush1.msra.mxu0 0.0
    %210 = vmatprep.subr.mxu0 0.0
    %211 = vmatpush1.msra.mxu0 0.0
    %212 = vmatprep.subr.mxu0 0.0
    %213 = vmatpush1.msra.mxu0 0.0
    %214 = vmatprep.subr.mxu0 0.0
    %215 = vmatpush1.msra.mxu0 0.0
    %216 = vmatprep.subr.mxu0 0.0
    %217 = vmatpush1.msra.mxu0 0.0
    %218 = vmatprep.subr.mxu0 0.0
    %219 = vmatpush1.msra.mxu0 0.0
    %220 = vmatprep.subr.mxu0 0.0
    %221 = vmatpush1.msra.mxu0 %v173
    %222 = vmatprep.subr.mxu0 0.0
    %223 = vmatpush1.msra.mxu0 %v172
    %224 = vmatprep.subr.mxu0 0.0
    %225 = vmatpush1.msra.mxu0 %v171
    %226 = vmatprep.subr.mxu0 0.0
    %227 = vmatpush1.msra.mxu0 %v170
    %228 = vmatprep.subr.mxu0 0.0
    %229 = vmatpush2.msra.mxu0 0.0
    %230 = vmatprep.subr.mxu0 0.0
    %231 = vmatpush2.msra.mxu0 0.0
    %232 = vmatprep.subr.mxu0 0.0
    %233 = vmatpush2.msra.mxu0 0.0
    %234 = vmatprep.subr.mxu0 0.0
    %235 = vmatpush2.msra.mxu0 0.0
    %236 = vmatprep.subr.mxu0 0.0
    %237 = vmatpush2.msra.mxu0 0.0
    %238 = vmatprep.subr.mxu0 0.0
    %239 = vmatpush2.msra.mxu0 0.0
    %240 = vmatprep.subr.mxu0 0.0
    %241 = vmatpush2.msra.mxu0 0.0
    %242 = vmatprep.subr.mxu0 0.0
    %243 = vmatpush2.msra.mxu0 0.0
    %244 = vmatprep.subr.mxu0 0.0
    %245 = vmatpush2.msra.mxu0 0.0
    %246 = vmatprep.subr.mxu0 0.0
    %247 = vmatpush2.msra.mxu0 0.0
    %248 = vmatprep.subr.mxu0 0.0
    %249 = vmatpush2.msra.mxu0 0.0
    %250 = vmatprep.subr.mxu0 0.0
    %251 = vmatpush2.msra.mxu0 0.0
    %252 = vmatprep.subr.mxu0 0.0
    %253 = vmatpush2.msra.mxu0 0.0
    %254 = vmatprep.subr.mxu0 0.0
    %255 = vmatpush2.msra.mxu0 0.0
    %256 = vmatprep.subr.mxu0 0.0
    %257 = vmatpush2.msra.mxu0 0.0
    %258 = vmatprep.subr.mxu0 0.0
    %259 = vmatpush2.msra.mxu0 0.0
    %260 = vmatprep.mubr.f32.mxu0 0.0
    %261 = vmatmul.mubr.f32.gmra.mxu0 %v194
    %v262 = vpop.f32.mrf.mxu0
    %v263 = vadd.f32 0.0, %v262
    %v264 = vpop.f32.mrf.mxu0
    %265 = vdwg.mxu0
    %v266 = vadd.f32 %v132, %v263
    %v267 = vtanh.pop %v266
    %v268 = vxor.u32 %v266, 2147483648
    %v269 = vmul.f32 %v268, 1.442695
    %v270 = vpow.pop %v269
    %v271 = vadd.f32 %v270, 1.0
    %v272 = vrcp.pop %v271
    %v273 = vmul.f32 1.0, %v272
    %v274 = vsel %vm191, %v267, %v273
    %v275 = vmul.f32 %v274, 0.0
    %277 = vrot.lane.b32.xlu0 %v274, 64
    %v278 = vpop.permute.xlu0 %277
    %v280 = vmul.f32 %v274, %v278
    %282 = vrot.lane.b32.xlu0 %v280, 32
    %v283 = vpop.permute.xlu0 %282
    %v285 = vadd.f32 %v275, %v283
    %v286 = vtanh.pop %v285
    %288 = vrot.lane.b32.xlu0 %v286, 64
    %v289 = vpop.permute.xlu0 %288
    %v291 = vmul.f32 %v274, %v289
    %293 = vrot.lane.b32.xlu0 %v291, 32
    %v294 = vpop.permute.xlu0 %293
    %v296 = vsel %vm192, %v294, 0.0
    %vm297 = vcmask 523264
    %v299 = vsel %vm297, %v296, 0
    %301 = vmatprep.subr.mxu0 0.0
    %302 = vmatpush1.msra.mxu0 0.0
    %303 = vmatprep.subr.mxu0 0.0
    %304 = vmatpush1.msra.mxu0 0.0
    %305 = vmatprep.subr.mxu0 0.0
    %306 = vmatpush1.msra.mxu0 0.0
    %307 = vmatprep.subr.mxu0 0.0
    %308 = vmatpush1.msra.mxu0 0.0
    %309 = vmatprep.subr.mxu0 0.0
    %310 = vmatpush1.msra.mxu0 0.0
    %311 = vmatprep.subr.mxu0 0.0
    %312 = vmatpush1.msra.mxu0 0.0
    %313 = vmatprep.subr.mxu0 0.0
    %314 = vmatpush1.msra.mxu0 0.0
    %315 = vmatprep.subr.mxu0 0.0
    %316 = vmatpush1.msra.mxu0 0.0
    %317 = vmatprep.subr.mxu0 0.0
    %318 = vmatpush1.msra.mxu0 %v181
    %319 = vmatprep.subr.mxu0 0.0
    %320 = vmatpush1.msra.mxu0 %v180
    %321 = vmatprep.subr.mxu0 0.0
    %322 = vmatpush1.msra.mxu0 %v179
    %323 = vmatprep.subr.mxu0 0.0
    %324 = vmatpush1.msra.mxu0 %v178
    %325 = vmatprep.subr.mxu0 0.0
    %326 = vmatpush1.msra.mxu0 %v177
    %327 = vmatprep.subr.mxu0 0.0
    %328 = vmatpush1.msra.mxu0 %v176
    %329 = vmatprep.subr.mxu0 0.0
    %330 = vmatpush1.msra.mxu0 %v175
    %331 = vmatprep.subr.mxu0 0.0
    %332 = vmatpush1.msra.mxu0 %v174
    %333 = vmatprep.subr.mxu0 0.0
    %334 = vmatpush2.msra.mxu0 0.0
    %335 = vmatprep.subr.mxu0 0.0
    %336 = vmatpush2.msra.mxu0 0.0
    %337 = vmatprep.subr.mxu0 0.0
    %338 = vmatpush2.msra.mxu0 0.0
    %339 = vmatprep.subr.mxu0 0.0
    %340 = vmatpush2.msra.mxu0 0.0
    %341 = vmatprep.subr.mxu0 0.0
    %342 = vmatpush2.msra.mxu0 0.0
    %343 = vmatprep.subr.mxu0 0.0
    %344 = vmatpush2.msra.mxu0 0.0
    %345 = vmatprep.subr.mxu0 0.0
    %346 = vmatpush2.msra.mxu0 0.0
    %347 = vmatprep.subr.mxu0 0.0
    %348 = vmatpush2.msra.mxu0 0.0
    %349 = vmatprep.subr.mxu0 0.0
    %350 = vmatpush2.msra.mxu0 0.0
    %351 = vmatprep.subr.mxu0 0.0
    %352 = vmatpush2.msra.mxu0 0.0
    %353 = vmatprep.subr.mxu0 0.0
    %354 = vmatpush2.msra.mxu0 0.0
    %355 = vmatprep.subr.mxu0 0.0
    %356 = vmatpush2.msra.mxu0 0.0
    %357 = vmatprep.subr.mxu0 0.0
    %358 = vmatpush2.msra.mxu0 0.0
    %359 = vmatprep.subr.mxu0 0.0
    %360 = vmatpush2.msra.mxu0 0.0
    %361 = vmatprep.subr.mxu0 0.0
    %362 = vmatpush2.msra.mxu0 0.0
    %363 = vmatprep.subr.mxu0 0.0
    %364 = vmatpush2.msra.mxu0 0.0
    %365 = vmatprep.mubr.f32.mxu0 0.0
    %366 = vmatmul.mubr.f32.gmra.mxu0 %v299
    %v367 = vpop.f32.mrf.mxu0
    %v368 = vadd.f32 %v186, %v367
    %v369 = vpop.f32.mrf.mxu0
    %370 = vdwg.mxu0
    %v371 = vtanh.pop %v368
    %v372 = vxor.u32 %v368, 2147483648
    %v373 = vmul.f32 %v372, 1.442695
    %v374 = vpow.pop %v373
    %v375 = vadd.f32 %v374, 1.0
    %v376 = vrcp.pop %v375
    %v377 = vmul.f32 1.0, %v376
    %v378 = vsel %vm191, %v371, %v377
    %v379 = vmul.f32 %v378, 0.0
    %381 = vrot.lane.b32.xlu0 %v378, 64
    %v382 = vpop.permute.xlu0 %381
    %v384 = vmul.f32 %v378, %v382
    %386 = vrot.lane.b32.xlu0 %v384, 32
    %v387 = vpop.permute.xlu0 %386
    %v389 = vadd.f32 %v379, %v387
    %v390 = vtanh.pop %v389
    %392 = vrot.lane.b32.xlu0 %v390, 64
    %v393 = vpop.permute.xlu0 %392
    %v395 = vmul.f32 %v378, %v393
    %v396 = vsel %vm192, %v294, 0
    %398 = vmatprep.subr.mxu0 0.0
    %399 = vmatpush1.msra.mxu0 0.0
    %400 = vmatprep.subr.mxu0 0.0
    %401 = vmatpush1.msra.mxu0 0.0
    %402 = vmatprep.subr.mxu0 0.0
    %403 = vmatpush1.msra.mxu0 0.0
    %404 = vmatprep.subr.mxu0 0.0
    %405 = vmatpush1.msra.mxu0 0.0
    %406 = vmatprep.subr.mxu0 0.0
    %407 = vmatpush1.msra.mxu0 0.0
    %408 = vmatprep.subr.mxu0 0.0
    %409 = vmatpush1.msra.mxu0 0.0
    %410 = vmatprep.subr.mxu0 0.0
    %411 = vmatpush1.msra.mxu0 0.0
    %412 = vmatprep.subr.mxu0 0.0
    %413 = vmatpush1.msra.mxu0 0.0
    %414 = vmatprep.subr.mxu0 0.0
    %415 = vmatpush1.msra.mxu0 0.0
    %416 = vmatprep.subr.mxu0 0.0
    %417 = vmatpush1.msra.mxu0 0.0
    %418 = vmatprep.subr.mxu0 0.0
    %419 = vmatpush1.msra.mxu0 0.0
    %420 = vmatprep.subr.mxu0 0.0
    %421 = vmatpush1.msra.mxu0 0.0
    %422 = vmatprep.subr.mxu0 0.0
    %423 = vmatpush1.msra.mxu0 %v173
    %424 = vmatprep.subr.mxu0 0.0
    %425 = vmatpush1.msra.mxu0 %v172
    %426 = vmatprep.subr.mxu0 0.0
    %427 = vmatpush1.msra.mxu0 %v171
    %428 = vmatprep.subr.mxu0 0.0
    %429 = vmatpush1.msra.mxu0 %v170
    %430 = vmatprep.subr.mxu0 0.0
    %431 = vmatpush2.msra.mxu0 0.0
    %432 = vmatprep.subr.mxu0 0.0
    %433 = vmatpush2.msra.mxu0 0.0
    %434 = vmatprep.subr.mxu0 0.0
    %435 = vmatpush2.msra.mxu0 0.0
    %436 = vmatprep.subr.mxu0 0.0
    %437 = vmatpush2.msra.mxu0 0.0
    %438 = vmatprep.subr.mxu0 0.0
    %439 = vmatpush2.msra.mxu0 0.0
    %440 = vmatprep.subr.mxu0 0.0
    %441 = vmatpush2.msra.mxu0 0.0
    %442 = vmatprep.subr.mxu0 0.0
    %443 = vmatpush2.msra.mxu0 0.0
    %444 = vmatprep.subr.mxu0 0.0
    %445 = vmatpush2.msra.mxu0 0.0
    %446 = vmatprep.subr.mxu0 0.0
    %447 = vmatpush2.msra.mxu0 0.0
    %448 = vmatprep.subr.mxu0 0.0
    %449 = vmatpush2.msra.mxu0 0.0
    %450 = vmatprep.subr.mxu0 0.0
    %451 = vmatpush2.msra.mxu0 0.0
    %452 = vmatprep.subr.mxu0 0.0
    %453 = vmatpush2.msra.mxu0 0.0
    %454 = vmatprep.subr.mxu0 0.0
    %455 = vmatpush2.msra.mxu0 0.0
    %456 = vmatprep.subr.mxu0 0.0
    %457 = vmatpush2.msra.mxu0 0.0
    %458 = vmatprep.subr.mxu0 0.0
    %459 = vmatpush2.msra.mxu0 0.0
    %460 = vmatprep.subr.mxu0 0.0
    %461 = vmatpush2.msra.mxu0 0.0
    %462 = vmatprep.mubr.f32.mxu0 0.0
    %463 = vmatmul.mubr.f32.gmra.mxu0 %v396
    %v464 = vpop.f32.mrf.mxu0
    %v465 = vadd.f32 0.0, %v464
    %v466 = vpop.f32.mrf.mxu0
    %467 = vdwg.mxu0
    %v468 = vadd.f32 %v137, %v465
    %v469 = vtanh.pop %v468
    %v470 = vxor.u32 %v468, 2147483648
    %v471 = vmul.f32 %v470, 1.442695
    %v472 = vpow.pop %v471
    %v473 = vadd.f32 %v472, 1.0
    %v474 = vrcp.pop %v473
    %v475 = vmul.f32 1.0, %v474
    %v476 = vsel %vm191, %v469, %v475
    %v477 = vmul.f32 %v476, %v285
    %479 = vrot.lane.b32.xlu0 %v476, 64
    %v480 = vpop.permute.xlu0 %479
    %v482 = vmul.f32 %v476, %v480
    %484 = vrot.lane.b32.xlu0 %v482, 32
    %v485 = vpop.permute.xlu0 %484
    %v487 = vadd.f32 %v477, %v485
    %v488 = vtanh.pop %v487
    %490 = vrot.lane.b32.xlu0 %v488, 64
    %v491 = vpop.permute.xlu0 %490
    %v493 = vmul.f32 %v476, %v491
    %495 = vrot.lane.b32.xlu0 %v493, 32
    %v496 = vpop.permute.xlu0 %495
    %499 = vrot.lane.b32.xlu0 %v395, 64
    %v500 = vpop.permute.xlu0 %499
    %v502 = vsel %vm192, %v496, %v500
    %v504 = vsel %vm297, %v502, 0
    %506 = vmatprep.subr.mxu0 0.0
    %507 = vmatpush1.msra.mxu0 0.0
    %508 = vmatprep.subr.mxu0 0.0
    %509 = vmatpush1.msra.mxu0 0.0
    %510 = vmatprep.subr.mxu0 0.0
    %511 = vmatpush1.msra.mxu0 0.0
    %512 = vmatprep.subr.mxu0 0.0
    %513 = vmatpush1.msra.mxu0 0.0
    %514 = vmatprep.subr.mxu0 0.0
    %515 = vmatpush1.msra.mxu0 0.0
    %516 = vmatprep.subr.mxu0 0.0
    %517 = vmatpush1.msra.mxu0 0.0
    %518 = vmatprep.subr.mxu0 0.0
    %519 = vmatpush1.msra.mxu0 0.0
    %520 = vmatprep.subr.mxu0 0.0
    %521 = vmatpush1.msra.mxu0 0.0
    %522 = vmatprep.subr.mxu0 0.0
    %523 = vmatpush1.msra.mxu0 %v181
    %524 = vmatprep.subr.mxu0 0.0
    %525 = vmatpush1.msra.mxu0 %v180
    %526 = vmatprep.subr.mxu0 0.0
    %527 = vmatpush1.msra.mxu0 %v179
    %528 = vmatprep.subr.mxu0 0.0
    %529 = vmatpush1.msra.mxu0 %v178
    %530 = vmatprep.subr.mxu0 0.0
    %531 = vmatpush1.msra.mxu0 %v177
    %532 = vmatprep.subr.mxu0 0.0
    %533 = vmatpush1.msra.mxu0 %v176
    %534 = vmatprep.subr.mxu0 0.0
    %535 = vmatpush1.msra.mxu0 %v175
    %536 = vmatprep.subr.mxu0 0.0
    %537 = vmatpush1.msra.mxu0 %v174
    %538 = vmatprep.subr.mxu0 0.0
    %539 = vmatpush2.msra.mxu0 0.0
    %540 = vmatprep.subr.mxu0 0.0
    %541 = vmatpush2.msra.mxu0 0.0
    %542 = vmatprep.subr.mxu0 0.0
    %543 = vmatpush2.msra.mxu0 0.0
    %544 = vmatprep.subr.mxu0 0.0
    %545 = vmatpush2.msra.mxu0 0.0
    %546 = vmatprep.subr.mxu0 0.0
    %547 = vmatpush2.msra.mxu0 0.0
    %548 = vmatprep.subr.mxu0 0.0
    %549 = vmatpush2.msra.mxu0 0.0
    %550 = vmatprep.subr.mxu0 0.0
    %551 = vmatpush2.msra.mxu0 0.0
    %552 = vmatprep.subr.mxu0 0.0
    %553 = vmatpush2.msra.mxu0 0.0
    %554 = vmatprep.subr.mxu0 0.0
    %555 = vmatpush2.msra.mxu0 0.0
    %556 = vmatprep.subr.mxu0 0.0
    %557 = vmatpush2.msra.mxu0 0.0
    %558 = vmatprep.subr.mxu0 0.0
    %559 = vmatpush2.msra.mxu0 0.0
    %560 = vmatprep.subr.mxu0 0.0
    %561 = vmatpush2.msra.mxu0 0.0
    %562 = vmatprep.subr.mxu0 0.0
    %563 = vmatpush2.msra.mxu0 0.0
    %564 = vmatprep.subr.mxu0 0.0
    %565 = vmatpush2.msra.mxu0 0.0
    %566 = vmatprep.subr.mxu0 0.0
    %567 = vmatpush2.msra.mxu0 0.0
    %568 = vmatprep.subr.mxu0 0.0
    %569 = vmatpush2.msra.mxu0 0.0
    %570 = vmatprep.mubr.f32.mxu0 0.0
    %571 = vmatmul.mubr.f32.gmra.mxu0 %v504
    %v572 = vpop.f32.mrf.mxu0
    %v573 = vadd.f32 %v186, %v572
    %v574 = vpop.f32.mrf.mxu0
    %575 = vdwg.mxu0
    %v576 = vtanh.pop %v573
    %v577 = vxor.u32 %v573, 2147483648
    %v578 = vmul.f32 %v577, 1.442695
    %v579 = vpow.pop %v578
    %v580 = vadd.f32 %v579, 1.0
    %v581 = vrcp.pop %v580
    %v582 = vmul.f32 1.0, %v581
    %v583 = vsel %vm191, %v576, %v582
    %v584 = vmul.f32 %v583, %v389
    %586 = vrot.lane.b32.xlu0 %v583, 64
    %v587 = vpop.permute.xlu0 %586
    %v589 = vmul.f32 %v583, %v587
    %591 = vrot.lane.b32.xlu0 %v589, 32
    %v592 = vpop.permute.xlu0 %591
    %v594 = vadd.f32 %v584, %v592
    %v595 = vtanh.pop %v594
    %597 = vrot.lane.b32.xlu0 %v595, 64
    %v598 = vpop.permute.xlu0 %597
    %v600 = vmul.f32 %v583, %v598
    %v601 = vsel %vm192, %v496, 0
    %603 = vmatprep.subr.mxu0 0.0
    %604 = vmatpush1.msra.mxu0 0.0
    %605 = vmatprep.subr.mxu0 0.0
    %606 = vmatpush1.msra.mxu0 0.0
    %607 = vmatprep.subr.mxu0 0.0
    %608 = vmatpush1.msra.mxu0 0.0
    %609 = vmatprep.subr.mxu0 0.0
    %610 = vmatpush1.msra.mxu0 0.0
    %611 = vmatprep.subr.mxu0 0.0
    %612 = vmatpush1.msra.mxu0 0.0
    %613 = vmatprep.subr.mxu0 0.0
    %614 = vmatpush1.msra.mxu0 0.0
    %615 = vmatprep.subr.mxu0 0.0
    %616 = vmatpush1.msra.mxu0 0.0
    %617 = vmatprep.subr.mxu0 0.0
    %618 = vmatpush1.msra.mxu0 0.0
    %619 = vmatprep.subr.mxu0 0.0
    %620 = vmatpush1.msra.mxu0 0.0
    %621 = vmatprep.subr.mxu0 0.0
    %622 = vmatpush1.msra.mxu0 0.0
    %623 = vmatprep.subr.mxu0 0.0
    %624 = vmatpush1.msra.mxu0 0.0
    %625 = vmatprep.subr.mxu0 0.0
    %626 = vmatpush1.msra.mxu0 0.0
    %627 = vmatprep.subr.mxu0 0.0
    %628 = vmatpush1.msra.mxu0 %v173
    %629 = vmatprep.subr.mxu0 0.0
    %630 = vmatpush1.msra.mxu0 %v172
    %631 = vmatprep.subr.mxu0 0.0
    %632 = vmatpush1.msra.mxu0 %v171
    %633 = vmatprep.subr.mxu0 0.0
    %634 = vmatpush1.msra.mxu0 %v170
    %635 = vmatprep.subr.mxu0 0.0
    %636 = vmatpush2.msra.mxu0 0.0
    %637 = vmatprep.subr.mxu0 0.0
    %638 = vmatpush2.msra.mxu0 0.0
    %639 = vmatprep.subr.mxu0 0.0
    %640 = vmatpush2.msra.mxu0 0.0
    %641 = vmatprep.subr.mxu0 0.0
    %642 = vmatpush2.msra.mxu0 0.0
    %643 = vmatprep.subr.mxu0 0.0
    %644 = vmatpush2.msra.mxu0 0.0
    %645 = vmatprep.subr.mxu0 0.0
    %646 = vmatpush2.msra.mxu0 0.0
    %647 = vmatprep.subr.mxu0 0.0
    %648 = vmatpush2.msra.mxu0 0.0
    %649 = vmatprep.subr.mxu0 0.0
    %650 = vmatpush2.msra.mxu0 0.0
    %651 = vmatprep.subr.mxu0 0.0
    %652 = vmatpush2.msra.mxu0 0.0
    %653 = vmatprep.subr.mxu0 0.0
    %654 = vmatpush2.msra.mxu0 0.0
    %655 = vmatprep.subr.mxu0 0.0
    %656 = vmatpush2.msra.mxu0 0.0
    %657 = vmatprep.subr.mxu0 0.0
    %658 = vmatpush2.msra.mxu0 0.0
    %659 = vmatprep.subr.mxu0 0.0
    %660 = vmatpush2.msra.mxu0 0.0
    %661 = vmatprep.subr.mxu0 0.0
    %662 = vmatpush2.msra.mxu0 0.0
    %663 = vmatprep.subr.mxu0 0.0
    %664 = vmatpush2.msra.mxu0 0.0
    %665 = vmatprep.subr.mxu0 0.0
    %666 = vmatpush2.msra.mxu0 0.0
    %667 = vmatprep.mubr.f32.mxu0 0.0
    %668 = vmatmul.mubr.f32.gmra.mxu0 %v601
    %v669 = vpop.f32.mrf.mxu0
    %v670 = vadd.f32 0.0, %v669
    %v671 = vpop.f32.mrf.mxu0
    %672 = vdwg.mxu0
    %v673 = vadd.f32 %v142, %v670
    %v674 = vtanh.pop %v673
    %v675 = vxor.u32 %v673, 2147483648
    %v676 = vmul.f32 %v675, 1.442695
    %v677 = vpow.pop %v676
    %v678 = vadd.f32 %v677, 1.0
    %v679 = vrcp.pop %v678
    %v680 = vmul.f32 1.0, %v679
    %v681 = vsel %vm191, %v674, %v680
    %v682 = vmul.f32 %v681, %v487
    %684 = vrot.lane.b32.xlu0 %v681, 64
    %v685 = vpop.permute.xlu0 %684
    %v687 = vmul.f32 %v681, %v685
    %689 = vrot.lane.b32.xlu0 %v687, 32
    %v690 = vpop.permute.xlu0 %689
    %v692 = vadd.f32 %v682, %v690
    %v693 = vtanh.pop %v692
    %695 = vrot.lane.b32.xlu0 %v693, 64
    %v696 = vpop.permute.xlu0 %695
    %v698 = vmul.f32 %v681, %v696
    %700 = vrot.lane.b32.xlu0 %v698, 32
    %v701 = vpop.permute.xlu0 %700
    %704 = vrot.lane.b32.xlu0 %v600, 64
    %v705 = vpop.permute.xlu0 %704
    %v707 = vsel %vm192, %v701, %v705
    %v709 = vsel %vm297, %v707, 0
    %711 = vmatprep.subr.mxu0 0.0
    %712 = vmatpush1.msra.mxu0 0.0
    %713 = vmatprep.subr.mxu0 0.0
    %714 = vmatpush1.msra.mxu0 0.0
    %715 = vmatprep.subr.mxu0 0.0
    %716 = vmatpush1.msra.mxu0 0.0
    %717 = vmatprep.subr.mxu0 0.0
    %718 = vmatpush1.msra.mxu0 0.0
    %719 = vmatprep.subr.mxu0 0.0
    %720 = vmatpush1.msra.mxu0 0.0
    %721 = vmatprep.subr.mxu0 0.0
    %722 = vmatpush1.msra.mxu0 0.0
    %723 = vmatprep.subr.mxu0 0.0
    %724 = vmatpush1.msra.mxu0 0.0
    %725 = vmatprep.subr.mxu0 0.0
    %726 = vmatpush1.msra.mxu0 0.0
    %727 = vmatprep.subr.mxu0 0.0
    %728 = vmatpush1.msra.mxu0 %v181
    %729 = vmatprep.subr.mxu0 0.0
    %730 = vmatpush1.msra.mxu0 %v180
    %731 = vmatprep.subr.mxu0 0.0
    %732 = vmatpush1.msra.mxu0 %v179
    %733 = vmatprep.subr.mxu0 0.0
    %734 = vmatpush1.msra.mxu0 %v178
    %735 = vmatprep.subr.mxu0 0.0
    %736 = vmatpush1.msra.mxu0 %v177
    %737 = vmatprep.subr.mxu0 0.0
    %738 = vmatpush1.msra.mxu0 %v176
    %739 = vmatprep.subr.mxu0 0.0
    %740 = vmatpush1.msra.mxu0 %v175
    %741 = vmatprep.subr.mxu0 0.0
    %742 = vmatpush1.msra.mxu0 %v174
    %743 = vmatprep.subr.mxu0 0.0
    %744 = vmatpush2.msra.mxu0 0.0
    %745 = vmatprep.subr.mxu0 0.0
    %746 = vmatpush2.msra.mxu0 0.0
    %747 = vmatprep.subr.mxu0 0.0
    %748 = vmatpush2.msra.mxu0 0.0
    %749 = vmatprep.subr.mxu0 0.0
    %750 = vmatpush2.msra.mxu0 0.0
    %751 = vmatprep.subr.mxu0 0.0
    %752 = vmatpush2.msra.mxu0 0.0
    %753 = vmatprep.subr.mxu0 0.0
    %754 = vmatpush2.msra.mxu0 0.0
    %755 = vmatprep.subr.mxu0 0.0
    %756 = vmatpush2.msra.mxu0 0.0
    %757 = vmatprep.subr.mxu0 0.0
    %758 = vmatpush2.msra.mxu0 0.0
    %759 = vmatprep.subr.mxu0 0.0
    %760 = vmatpush2.msra.mxu0 0.0
    %761 = vmatprep.subr.mxu0 0.0
    %762 = vmatpush2.msra.mxu0 0.0
    %763 = vmatprep.subr.mxu0 0.0
    %764 = vmatpush2.msra.mxu0 0.0
    %765 = vmatprep.subr.mxu0 0.0
    %766 = vmatpush2.msra.mxu0 0.0
    %767 = vmatprep.subr.mxu0 0.0
    %768 = vmatpush2.msra.mxu0 0.0
    %769 = vmatprep.subr.mxu0 0.0
    %770 = vmatpush2.msra.mxu0 0.0
    %771 = vmatprep.subr.mxu0 0.0
    %772 = vmatpush2.msra.mxu0 0.0
    %773 = vmatprep.subr.mxu0 0.0
    %774 = vmatpush2.msra.mxu0 0.0
    %775 = vmatprep.mubr.f32.mxu0 0.0
    %776 = vmatmul.mubr.f32.gmra.mxu0 %v709
    %v777 = vpop.f32.mrf.mxu0
    %v778 = vadd.f32 %v186, %v777
    %v779 = vpop.f32.mrf.mxu0
    %780 = vdwg.mxu0
    %v781 = vtanh.pop %v778
    %v782 = vxor.u32 %v778, 2147483648
    %v783 = vmul.f32 %v782, 1.442695
    %v784 = vpow.pop %v783
    %v785 = vadd.f32 %v784, 1.0
    %v786 = vrcp.pop %v785
    %v787 = vmul.f32 1.0, %v786
    %v788 = vsel %vm191, %v781, %v787
    %v789 = vmul.f32 %v788, %v594
    %791 = vrot.lane.b32.xlu0 %v788, 64
    %v792 = vpop.permute.xlu0 %791
    %v794 = vmul.f32 %v788, %v792
    %796 = vrot.lane.b32.xlu0 %v794, 32
    %v797 = vpop.permute.xlu0 %796
    %v799 = vadd.f32 %v789, %v797
    %v800 = vtanh.pop %v799
    %802 = vrot.lane.b32.xlu0 %v800, 64
    %v803 = vpop.permute.xlu0 %802
    %v805 = vmul.f32 %v788, %v803
    %v806 = vsel %vm192, %v701, 0
    %808 = vmatprep.subr.mxu0 0.0
    %809 = vmatpush1.msra.mxu0 0.0
    %810 = vmatprep.subr.mxu0 0.0
    %811 = vmatpush1.msra.mxu0 0.0
    %812 = vmatprep.subr.mxu0 0.0
    %813 = vmatpush1.msra.mxu0 0.0
    %814 = vmatprep.subr.mxu0 0.0
    %815 = vmatpush1.msra.mxu0 0.0
    %816 = vmatprep.subr.mxu0 0.0
    %817 = vmatpush1.msra.mxu0 0.0
    %818 = vmatprep.subr.mxu0 0.0
    %819 = vmatpush1.msra.mxu0 0.0
    %820 = vmatprep.subr.mxu0 0.0
    %821 = vmatpush1.msra.mxu0 0.0
    %822 = vmatprep.subr.mxu0 0.0
    %823 = vmatpush1.msra.mxu0 0.0
    %824 = vmatprep.subr.mxu0 0.0
    %825 = vmatpush1.msra.mxu0 0.0
    %826 = vmatprep.subr.mxu0 0.0
    %827 = vmatpush1.msra.mxu0 0.0
    %828 = vmatprep.subr.mxu0 0.0
    %829 = vmatpush1.msra.mxu0 0.0
    %830 = vmatprep.subr.mxu0 0.0
    %831 = vmatpush1.msra.mxu0 0.0
    %832 = vmatprep.subr.mxu0 0.0
    %833 = vmatpush1.msra.mxu0 %v173
    %834 = vmatprep.subr.mxu0 0.0
    %835 = vmatpush1.msra.mxu0 %v172
    %836 = vmatprep.subr.mxu0 0.0
    %837 = vmatpush1.msra.mxu0 %v171
    %838 = vmatprep.subr.mxu0 0.0
    %839 = vmatpush1.msra.mxu0 %v170
    %840 = vmatprep.subr.mxu0 0.0
    %841 = vmatpush2.msra.mxu0 0.0
    %842 = vmatprep.subr.mxu0 0.0
    %843 = vmatpush2.msra.mxu0 0.0
    %844 = vmatprep.subr.mxu0 0.0
    %845 = vmatpush2.msra.mxu0 0.0
    %846 = vmatprep.subr.mxu0 0.0
    %847 = vmatpush2.msra.mxu0 0.0
    %848 = vmatprep.subr.mxu0 0.0
    %849 = vmatpush2.msra.mxu0 0.0
    %850 = vmatprep.subr.mxu0 0.0
    %851 = vmatpush2.msra.mxu0 0.0
    %852 = vmatprep.subr.mxu0 0.0
    %853 = vmatpush2.msra.mxu0 0.0
    %854 = vmatprep.subr.mxu0 0.0
    %855 = vmatpush2.msra.mxu0 0.0
    %856 = vmatprep.subr.mxu0 0.0
    %857 = vmatpush2.msra.mxu0 0.0
    %858 = vmatprep.subr.mxu0 0.0
    %859 = vmatpush2.msra.mxu0 0.0
    %860 = vmatprep.subr.mxu0 0.0
    %861 = vmatpush2.msra.mxu0 0.0
    %862 = vmatprep.subr.mxu0 0.0
    %863 = vmatpush2.msra.mxu0 0.0
    %864 = vmatprep.subr.mxu0 0.0
    %865 = vmatpush2.msra.mxu0 0.0
    %866 = vmatprep.subr.mxu0 0.0
    %867 = vmatpush2.msra.mxu0 0.0
    %868 = vmatprep.subr.mxu0 0.0
    %869 = vmatpush2.msra.mxu0 0.0
    %870 = vmatprep.subr.mxu0 0.0
    %871 = vmatpush2.msra.mxu0 0.0
    %872 = vmatprep.mubr.f32.mxu0 0.0
    %873 = vmatmul.mubr.f32.gmra.mxu0 %v806
    %v874 = vpop.f32.mrf.mxu0
    %v875 = vadd.f32 0.0, %v874
    %v876 = vpop.f32.mrf.mxu0
    %877 = vdwg.mxu0
    %v878 = vadd.f32 %v147, %v875
    %v879 = vtanh.pop %v878
    %v880 = vxor.u32 %v878, 2147483648
    %v881 = vmul.f32 %v880, 1.442695
    %v882 = vpow.pop %v881
    %v883 = vadd.f32 %v882, 1.0
    %v884 = vrcp.pop %v883
    %v885 = vmul.f32 1.0, %v884
    %v886 = vsel %vm191, %v879, %v885
    %v887 = vmul.f32 %v886, %v692
    %889 = vrot.lane.b32.xlu0 %v886, 64
    %v890 = vpop.permute.xlu0 %889
    %v892 = vmul.f32 %v886, %v890
    %894 = vrot.lane.b32.xlu0 %v892, 32
    %v895 = vpop.permute.xlu0 %894
    %v897 = vadd.f32 %v887, %v895
    %v898 = vtanh.pop %v897
    %900 = vrot.lane.b32.xlu0 %v898, 64
    %v901 = vpop.permute.xlu0 %900
    %v903 = vmul.f32 %v886, %v901
    %905 = vrot.lane.b32.xlu0 %v903, 32
    %v906 = vpop.permute.xlu0 %905
    %909 = vrot.lane.b32.xlu0 %v805, 64
    %v910 = vpop.permute.xlu0 %909
    %v912 = vsel %vm192, %v906, %v910
    %v914 = vsel %vm297, %v912, 0
    %916 = vmatprep.subr.mxu0 0.0
    %917 = vmatpush1.msra.mxu0 0.0
    %918 = vmatprep.subr.mxu0 0.0
    %919 = vmatpush1.msra.mxu0 0.0
    %920 = vmatprep.subr.mxu0 0.0
    %921 = vmatpush1.msra.mxu0 0.0
    %922 = vmatprep.subr.mxu0 0.0
    %923 = vmatpush1.msra.mxu0 0.0
    %924 = vmatprep.subr.mxu0 0.0
    %925 = vmatpush1.msra.mxu0 0.0
    %926 = vmatprep.subr.mxu0 0.0
    %927 = vmatpush1.msra.mxu0 0.0
    %928 = vmatprep.subr.mxu0 0.0
    %929 = vmatpush1.msra.mxu0 0.0
    %930 = vmatprep.subr.mxu0 0.0
    %931 = vmatpush1.msra.mxu0 0.0
    %932 = vmatprep.subr.mxu0 0.0
    %933 = vmatpush1.msra.mxu0 %v181
    %934 = vmatprep.subr.mxu0 0.0
    %935 = vmatpush1.msra.mxu0 %v180
    %936 = vmatprep.subr.mxu0 0.0
    %937 = vmatpush1.msra.mxu0 %v179
    %938 = vmatprep.subr.mxu0 0.0
    %939 = vmatpush1.msra.mxu0 %v178
    %940 = vmatprep.subr.mxu0 0.0
    %941 = vmatpush1.msra.mxu0 %v177
    %942 = vmatprep.subr.mxu0 0.0
    %943 = vmatpush1.msra.mxu0 %v176
    %944 = vmatprep.subr.mxu0 0.0
    %945 = vmatpush1.msra.mxu0 %v175
    %946 = vmatprep.subr.mxu0 0.0
    %947 = vmatpush1.msra.mxu0 %v174
    %948 = vmatprep.subr.mxu0 0.0
    %949 = vmatpush2.msra.mxu0 0.0
    %950 = vmatprep.subr.mxu0 0.0
    %951 = vmatpush2.msra.mxu0 0.0
    %952 = vmatprep.subr.mxu0 0.0
    %953 = vmatpush2.msra.mxu0 0.0
    %954 = vmatprep.subr.mxu0 0.0
    %955 = vmatpush2.msra.mxu0 0.0
    %956 = vmatprep.subr.mxu0 0.0
    %957 = vmatpush2.msra.mxu0 0.0
    %958 = vmatprep.subr.mxu0 0.0
    %959 = vmatpush2.msra.mxu0 0.0
    %960 = vmatprep.subr.mxu0 0.0
    %961 = vmatpush2.msra.mxu0 0.0
    %962 = vmatprep.subr.mxu0 0.0
    %963 = vmatpush2.msra.mxu0 0.0
    %964 = vmatprep.subr.mxu0 0.0
    %965 = vmatpush2.msra.mxu0 0.0
    %966 = vmatprep.subr.mxu0 0.0
    %967 = vmatpush2.msra.mxu0 0.0
    %968 = vmatprep.subr.mxu0 0.0
    %969 = vmatpush2.msra.mxu0 0.0
    %970 = vmatprep.subr.mxu0 0.0
    %971 = vmatpush2.msra.mxu0 0.0
    %972 = vmatprep.subr.mxu0 0.0
    %973 = vmatpush2.msra.mxu0 0.0
    %974 = vmatprep.subr.mxu0 0.0
    %975 = vmatpush2.msra.mxu0 0.0
    %976 = vmatprep.subr.mxu0 0.0
    %977 = vmatpush2.msra.mxu0 0.0
    %978 = vmatprep.subr.mxu0 0.0
    %979 = vmatpush2.msra.mxu0 0.0
    %980 = vmatprep.mubr.f32.mxu0 0.0
    %981 = vmatmul.mubr.f32.gmra.mxu0 %v914
    %v982 = vpop.f32.mrf.mxu0
    %v983 = vadd.f32 %v186, %v982
    %v984 = vpop.f32.mrf.mxu0
    %985 = vdwg.mxu0
    %v986 = vtanh.pop %v983
    %v987 = vxor.u32 %v983, 2147483648
    %v988 = vmul.f32 %v987, 1.442695
    %v989 = vpow.pop %v988
    %v990 = vadd.f32 %v989, 1.0
    %v991 = vrcp.pop %v990
    %v992 = vmul.f32 1.0, %v991
    %v993 = vsel %vm191, %v986, %v992
    %v994 = vmul.f32 %v993, %v799
    %996 = vrot.lane.b32.xlu0 %v993, 64
    %v997 = vpop.permute.xlu0 %996
    %v999 = vmul.f32 %v993, %v997
    %1001 = vrot.lane.b32.xlu0 %v999, 32
    %v1002 = vpop.permute.xlu0 %1001
    %v1004 = vadd.f32 %v994, %v1002
    %v1005 = vtanh.pop %v1004
    %1007 = vrot.lane.b32.xlu0 %v1005, 64
    %v1008 = vpop.permute.xlu0 %1007
    %v1010 = vmul.f32 %v993, %v1008
    %v1011 = vsel %vm192, %v906, 0
    %1013 = vmatprep.subr.mxu0 0.0
    %1014 = vmatpush1.msra.mxu0 0.0
    %1015 = vmatprep.subr.mxu0 0.0
    %1016 = vmatpush1.msra.mxu0 0.0
    %1017 = vmatprep.subr.mxu0 0.0
    %1018 = vmatpush1.msra.mxu0 0.0
    %1019 = vmatprep.subr.mxu0 0.0
    %1020 = vmatpush1.msra.mxu0 0.0
    %1021 = vmatprep.subr.mxu0 0.0
    %1022 = vmatpush1.msra.mxu0 0.0
    %1023 = vmatprep.subr.mxu0 0.0
    %1024 = vmatpush1.msra.mxu0 0.0
    %1025 = vmatprep.subr.mxu0 0.0
    %1026 = vmatpush1.msra.mxu0 0.0
    %1027 = vmatprep.subr.mxu0 0.0
    %1028 = vmatpush1.msra.mxu0 0.0
    %1029 = vmatprep.subr.mxu0 0.0
    %1030 = vmatpush1.msra.mxu0 0.0
    %1031 = vmatprep.subr.mxu0 0.0
    %1032 = vmatpush1.msra.mxu0 0.0
    %1033 = vmatprep.subr.mxu0 0.0
    %1034 = vmatpush1.msra.mxu0 0.0
    %1035 = vmatprep.subr.mxu0 0.0
    %1036 = vmatpush1.msra.mxu0 0.0
    %1037 = vmatprep.subr.mxu0 0.0
    %1038 = vmatpush1.msra.mxu0 %v173
    %1039 = vmatprep.subr.mxu0 0.0
    %1040 = vmatpush1.msra.mxu0 %v172
    %1041 = vmatprep.subr.mxu0 0.0
    %1042 = vmatpush1.msra.mxu0 %v171
    %1043 = vmatprep.subr.mxu0 0.0
    %1044 = vmatpush1.msra.mxu0 %v170
    %1045 = vmatprep.subr.mxu0 0.0
    %1046 = vmatpush2.msra.mxu0 0.0
    %1047 = vmatprep.subr.mxu0 0.0
    %1048 = vmatpush2.msra.mxu0 0.0
    %1049 = vmatprep.subr.mxu0 0.0
    %1050 = vmatpush2.msra.mxu0 0.0
    %1051 = vmatprep.subr.mxu0 0.0
    %1052 = vmatpush2.msra.mxu0 0.0
    %1053 = vmatprep.subr.mxu0 0.0
    %1054 = vmatpush2.msra.mxu0 0.0
    %1055 = vmatprep.subr.mxu0 0.0
    %1056 = vmatpush2.msra.mxu0 0.0
    %1057 = vmatprep.subr.mxu0 0.0
    %1058 = vmatpush2.msra.mxu0 0.0
    %1059 = vmatprep.subr.mxu0 0.0
    %1060 = vmatpush2.msra.mxu0 0.0
    %1061 = vmatprep.subr.mxu0 0.0
    %1062 = vmatpush2.msra.mxu0 0.0
    %1063 = vmatprep.subr.mxu0 0.0
    %1064 = vmatpush2.msra.mxu0 0.0
    %1065 = vmatprep.subr.mxu0 0.0
    %1066 = vmatpush2.msra.mxu0 0.0
    %1067 = vmatprep.subr.mxu0 0.0
    %1068 = vmatpush2.msra.mxu0 0.0
    %1069 = vmatprep.subr.mxu0 0.0
    %1070 = vmatpush2.msra.mxu0 0.0
    %1071 = vmatprep.subr.mxu0 0.0
    %1072 = vmatpush2.msra.mxu0 0.0
    %1073 = vmatprep.subr.mxu0 0.0
    %1074 = vmatpush2.msra.mxu0 0.0
    %1075 = vmatprep.subr.mxu0 0.0
    %1076 = vmatpush2.msra.mxu0 0.0
    %1077 = vmatprep.mubr.f32.mxu0 0.0
    %1078 = vmatmul.mubr.f32.gmra.mxu0 %v1011
    %v1079 = vpop.f32.mrf.mxu0
    %v1080 = vadd.f32 0.0, %v1079
    %v1081 = vpop.f32.mrf.mxu0
    %1082 = vdwg.mxu0
    %v1083 = vadd.f32 %v152, %v1080
    %v1084 = vtanh.pop %v1083
    %v1085 = vxor.u32 %v1083, 2147483648
    %v1086 = vmul.f32 %v1085, 1.442695
    %v1087 = vpow.pop %v1086
    %v1088 = vadd.f32 %v1087, 1.0
    %v1089 = vrcp.pop %v1088
    %v1090 = vmul.f32 1.0, %v1089
    %v1091 = vsel %vm191, %v1084, %v1090
    %v1092 = vmul.f32 %v1091, %v897
    %1094 = vrot.lane.b32.xlu0 %v1091, 64
    %v1095 = vpop.permute.xlu0 %1094
    %v1097 = vmul.f32 %v1091, %v1095
    %1099 = vrot.lane.b32.xlu0 %v1097, 32
    %v1100 = vpop.permute.xlu0 %1099
    %v1102 = vadd.f32 %v1092, %v1100
    %v1103 = vtanh.pop %v1102
    %1105 = vrot.lane.b32.xlu0 %v1103, 64
    %v1106 = vpop.permute.xlu0 %1105
    %v1108 = vmul.f32 %v1091, %v1106
    %1110 = vrot.lane.b32.xlu0 %v1108, 32
    %v1111 = vpop.permute.xlu0 %1110
    %1114 = vrot.lane.b32.xlu0 %v1010, 64
    %v1115 = vpop.permute.xlu0 %1114
    %v1117 = vsel %vm192, %v1111, %v1115
    %v1119 = vsel %vm297, %v1117, 0
    %1121 = vmatprep.subr.mxu0 0.0
    %1122 = vmatpush1.msra.mxu0 0.0
    %1123 = vmatprep.subr.mxu0 0.0
    %1124 = vmatpush1.msra.mxu0 0.0
    %1125 = vmatprep.subr.mxu0 0.0
    %1126 = vmatpush1.msra.mxu0 0.0
    %1127 = vmatprep.subr.mxu0 0.0
    %1128 = vmatpush1.msra.mxu0 0.0
    %1129 = vmatprep.subr.mxu0 0.0
    %1130 = vmatpush1.msra.mxu0 0.0
    %1131 = vmatprep.subr.mxu0 0.0
    %1132 = vmatpush1.msra.mxu0 0.0
    %1133 = vmatprep.subr.mxu0 0.0
    %1134 = vmatpush1.msra.mxu0 0.0
    %1135 = vmatprep.subr.mxu0 0.0
    %1136 = vmatpush1.msra.mxu0 0.0
    %1137 = vmatprep.subr.mxu0 0.0
    %1138 = vmatpush1.msra.mxu0 %v181
    %1139 = vmatprep.subr.mxu0 0.0
    %1140 = vmatpush1.msra.mxu0 %v180
    %1141 = vmatprep.subr.mxu0 0.0
    %1142 = vmatpush1.msra.mxu0 %v179
    %1143 = vmatprep.subr.mxu0 0.0
    %1144 = vmatpush1.msra.mxu0 %v178
    %1145 = vmatprep.subr.mxu0 0.0
    %1146 = vmatpush1.msra.mxu0 %v177
    %1147 = vmatprep.subr.mxu0 0.0
    %1148 = vmatpush1.msra.mxu0 %v176
    %1149 = vmatprep.subr.mxu0 0.0
    %1150 = vmatpush1.msra.mxu0 %v175
    %1151 = vmatprep.subr.mxu0 0.0
    %1152 = vmatpush1.msra.mxu0 %v174
    %1153 = vmatprep.subr.mxu0 0.0
    %1154 = vmatpush2.msra.mxu0 0.0
    %1155 = vmatprep.subr.mxu0 0.0
    %1156 = vmatpush2.msra.mxu0 0.0
    %1157 = vmatprep.subr.mxu0 0.0
    %1158 = vmatpush2.msra.mxu0 0.0
    %1159 = vmatprep.subr.mxu0 0.0
    %1160 = vmatpush2.msra.mxu0 0.0
    %1161 = vmatprep.subr.mxu0 0.0
    %1162 = vmatpush2.msra.mxu0 0.0
    %1163 = vmatprep.subr.mxu0 0.0
    %1164 = vmatpush2.msra.mxu0 0.0
    %1165 = vmatprep.subr.mxu0 0.0
    %1166 = vmatpush2.msra.mxu0 0.0
    %1167 = vmatprep.subr.mxu0 0.0
    %1168 = vmatpush2.msra.mxu0 0.0
    %1169 = vmatprep.subr.mxu0 0.0
    %1170 = vmatpush2.msra.mxu0 0.0
    %1171 = vmatprep.subr.mxu0 0.0
    %1172 = vmatpush2.msra.mxu0 0.0
    %1173 = vmatprep.subr.mxu0 0.0
    %1174 = vmatpush2.msra.mxu0 0.0
    %1175 = vmatprep.subr.mxu0 0.0
    %1176 = vmatpush2.msra.mxu0 0.0
    %1177 = vmatprep.subr.mxu0 0.0
    %1178 = vmatpush2.msra.mxu0 0.0
    %1179 = vmatprep.subr.mxu0 0.0
    %1180 = vmatpush2.msra.mxu0 0.0
    %1181 = vmatprep.subr.mxu0 0.0
    %1182 = vmatpush2.msra.mxu0 0.0
    %1183 = vmatprep.subr.mxu0 0.0
    %1184 = vmatpush2.msra.mxu0 0.0
    %1185 = vmatprep.mubr.f32.mxu0 0.0
    %1186 = vmatmul.mubr.f32.gmra.mxu0 %v1119
    %v1187 = vpop.f32.mrf.mxu0
    %v1188 = vadd.f32 %v186, %v1187
    %v1189 = vpop.f32.mrf.mxu0
    %1190 = vdwg.mxu0
    %v1191 = vtanh.pop %v1188
    %v1192 = vxor.u32 %v1188, 2147483648
    %v1193 = vmul.f32 %v1192, 1.442695
    %v1194 = vpow.pop %v1193
    %v1195 = vadd.f32 %v1194, 1.0
    %v1196 = vrcp.pop %v1195
    %v1197 = vmul.f32 1.0, %v1196
    %v1198 = vsel %vm191, %v1191, %v1197
    %v1199 = vmul.f32 %v1198, %v1004
    %1201 = vrot.lane.b32.xlu0 %v1198, 64
    %v1202 = vpop.permute.xlu0 %1201
    %v1204 = vmul.f32 %v1198, %v1202
    %1206 = vrot.lane.b32.xlu0 %v1204, 32
    %v1207 = vpop.permute.xlu0 %1206
    %v1209 = vadd.f32 %v1199, %v1207
    %v1210 = vtanh.pop %v1209
    %1212 = vrot.lane.b32.xlu0 %v1210, 64
    %v1213 = vpop.permute.xlu0 %1212
    %v1215 = vmul.f32 %v1198, %v1213
    %v1216 = vsel %vm192, %v1111, 0
    %1218 = vmatprep.subr.mxu0 0.0
    %1219 = vmatpush1.msra.mxu0 0.0
    %1220 = vmatprep.subr.mxu0 0.0
    %1221 = vmatpush1.msra.mxu0 0.0
    %1222 = vmatprep.subr.mxu0 0.0
    %1223 = vmatpush1.msra.mxu0 0.0
    %1224 = vmatprep.subr.mxu0 0.0
    %1225 = vmatpush1.msra.mxu0 0.0
    %1226 = vmatprep.subr.mxu0 0.0
    %1227 = vmatpush1.msra.mxu0 0.0
    %1228 = vmatprep.subr.mxu0 0.0
    %1229 = vmatpush1.msra.mxu0 0.0
    %1230 = vmatprep.subr.mxu0 0.0
    %1231 = vmatpush1.msra.mxu0 0.0
    %1232 = vmatprep.subr.mxu0 0.0
    %1233 = vmatpush1.msra.mxu0 0.0
    %1234 = vmatprep.subr.mxu0 0.0
    %1235 = vmatpush1.msra.mxu0 0.0
    %1236 = vmatprep.subr.mxu0 0.0
    %1237 = vmatpush1.msra.mxu0 0.0
    %1238 = vmatprep.subr.mxu0 0.0
    %1239 = vmatpush1.msra.mxu0 0.0
    %1240 = vmatprep.subr.mxu0 0.0
    %1241 = vmatpush1.msra.mxu0 0.0
    %1242 = vmatprep.subr.mxu0 0.0
    %1243 = vmatpush1.msra.mxu0 %v173
    %1244 = vmatprep.subr.mxu0 0.0
    %1245 = vmatpush1.msra.mxu0 %v172
    %1246 = vmatprep.subr.mxu0 0.0
    %1247 = vmatpush1.msra.mxu0 %v171
    %1248 = vmatprep.subr.mxu0 0.0
    %1249 = vmatpush1.msra.mxu0 %v170
    %1250 = vmatprep.subr.mxu0 0.0
    %1251 = vmatpush2.msra.mxu0 0.0
    %1252 = vmatprep.subr.mxu0 0.0
    %1253 = vmatpush2.msra.mxu0 0.0
    %1254 = vmatprep.subr.mxu0 0.0
    %1255 = vmatpush2.msra.mxu0 0.0
    %1256 = vmatprep.subr.mxu0 0.0
    %1257 = vmatpush2.msra.mxu0 0.0
    %1258 = vmatprep.subr.mxu0 0.0
    %1259 = vmatpush2.msra.mxu0 0.0
    %1260 = vmatprep.subr.mxu0 0.0
    %1261 = vmatpush2.msra.mxu0 0.0
    %1262 = vmatprep.subr.mxu0 0.0
    %1263 = vmatpush2.msra.mxu0 0.0
    %1264 = vmatprep.subr.mxu0 0.0
    %1265 = vmatpush2.msra.mxu0 0.0
    %1266 = vmatprep.subr.mxu0 0.0
    %1267 = vmatpush2.msra.mxu0 0.0
    %1268 = vmatprep.subr.mxu0 0.0
    %1269 = vmatpush2.msra.mxu0 0.0
    %1270 = vmatprep.subr.mxu0 0.0
    %1271 = vmatpush2.msra.mxu0 0.0
    %1272 = vmatprep.subr.mxu0 0.0
    %1273 = vmatpush2.msra.mxu0 0.0
    %1274 = vmatprep.subr.mxu0 0.0
    %1275 = vmatpush2.msra.mxu0 0.0
    %1276 = vmatprep.subr.mxu0 0.0
    %1277 = vmatpush2.msra.mxu0 0.0
    %1278 = vmatprep.subr.mxu0 0.0
    %1279 = vmatpush2.msra.mxu0 0.0
    %1280 = vmatprep.subr.mxu0 0.0
    %1281 = vmatpush2.msra.mxu0 0.0
    %1282 = vmatprep.mubr.f32.mxu0 0.0
    %1283 = vmatmul.mubr.f32.gmra.mxu0 %v1216
    %v1284 = vpop.f32.mrf.mxu0
    %v1285 = vadd.f32 0.0, %v1284
    %v1286 = vpop.f32.mrf.mxu0
    %1287 = vdwg.mxu0
    %v1288 = vadd.f32 %v157, %v1285
    %v1289 = vtanh.pop %v1288
    %v1290 = vxor.u32 %v1288, 2147483648
    %v1291 = vmul.f32 %v1290, 1.442695
    %v1292 = vpow.pop %v1291
    %v1293 = vadd.f32 %v1292, 1.0
    %v1294 = vrcp.pop %v1293
    %v1295 = vmul.f32 1.0, %v1294
    %v1296 = vsel %vm191, %v1289, %v1295
    %v1297 = vmul.f32 %v1296, %v1102
    %1299 = vrot.lane.b32.xlu0 %v1296, 64
    %v1300 = vpop.permute.xlu0 %1299
    %v1302 = vmul.f32 %v1296, %v1300
    %1304 = vrot.lane.b32.xlu0 %v1302, 32
    %v1305 = vpop.permute.xlu0 %1304
    %v1307 = vadd.f32 %v1297, %v1305
    %v1308 = vtanh.pop %v1307
    %1310 = vrot.lane.b32.xlu0 %v1308, 64
    %v1311 = vpop.permute.xlu0 %1310
    %v1313 = vmul.f32 %v1296, %v1311
    %1315 = vrot.lane.b32.xlu0 %v1313, 32
    %v1316 = vpop.permute.xlu0 %1315
    %1319 = vrot.lane.b32.xlu0 %v1215, 64
    %v1320 = vpop.permute.xlu0 %1319
    %v1322 = vsel %vm192, %v1316, %v1320
    %v1324 = vsel %vm297, %v1322, 0
    %1326 = vmatprep.subr.mxu0 0.0
    %1327 = vmatpush1.msra.mxu0 0.0
    %1328 = vmatprep.subr.mxu0 0.0
    %1329 = vmatpush1.msra.mxu0 0.0
    %1330 = vmatprep.subr.mxu0 0.0
    %1331 = vmatpush1.msra.mxu0 0.0
    %1332 = vmatprep.subr.mxu0 0.0
    %1333 = vmatpush1.msra.mxu0 0.0
    %1334 = vmatprep.subr.mxu0 0.0
    %1335 = vmatpush1.msra.mxu0 0.0
    %1336 = vmatprep.subr.mxu0 0.0
    %1337 = vmatpush1.msra.mxu0 0.0
    %1338 = vmatprep.subr.mxu0 0.0
    %1339 = vmatpush1.msra.mxu0 0.0
    %1340 = vmatprep.subr.mxu0 0.0
    %1341 = vmatpush1.msra.mxu0 0.0
    %1342 = vmatprep.subr.mxu0 0.0
    %1343 = vmatpush1.msra.mxu0 %v181
    %1344 = vmatprep.subr.mxu0 0.0
    %1345 = vmatpush1.msra.mxu0 %v180
    %1346 = vmatprep.subr.mxu0 0.0
    %1347 = vmatpush1.msra.mxu0 %v179
    %1348 = vmatprep.subr.mxu0 0.0
    %1349 = vmatpush1.msra.mxu0 %v178
    %1350 = vmatprep.subr.mxu0 0.0
    %1351 = vmatpush1.msra.mxu0 %v177
    %1352 = vmatprep.subr.mxu0 0.0
    %1353 = vmatpush1.msra.mxu0 %v176
    %1354 = vmatprep.subr.mxu0 0.0
    %1355 = vmatpush1.msra.mxu0 %v175
    %1356 = vmatprep.subr.mxu0 0.0
    %1357 = vmatpush1.msra.mxu0 %v174
    %1358 = vmatprep.subr.mxu0 0.0
    %1359 = vmatpush2.msra.mxu0 0.0
    %1360 = vmatprep.subr.mxu0 0.0
    %1361 = vmatpush2.msra.mxu0 0.0
    %1362 = vmatprep.subr.mxu0 0.0
    %1363 = vmatpush2.msra.mxu0 0.0
    %1364 = vmatprep.subr.mxu0 0.0
    %1365 = vmatpush2.msra.mxu0 0.0
    %1366 = vmatprep.subr.mxu0 0.0
    %1367 = vmatpush2.msra.mxu0 0.0
    %1368 = vmatprep.subr.mxu0 0.0
    %1369 = vmatpush2.msra.mxu0 0.0
    %1370 = vmatprep.subr.mxu0 0.0
    %1371 = vmatpush2.msra.mxu0 0.0
    %1372 = vmatprep.subr.mxu0 0.0
    %1373 = vmatpush2.msra.mxu0 0.0
    %1374 = vmatprep.subr.mxu0 0.0
    %1375 = vmatpush2.msra.mxu0 0.0
    %1376 = vmatprep.subr.mxu0 0.0
    %1377 = vmatpush2.msra.mxu0 0.0
    %1378 = vmatprep.subr.mxu0 0.0
    %1379 = vmatpush2.msra.mxu0 0.0
    %1380 = vmatprep.subr.mxu0 0.0
    %1381 = vmatpush2.msra.mxu0 0.0
    %1382 = vmatprep.subr.mxu0 0.0
    %1383 = vmatpush2.msra.mxu0 0.0
    %1384 = vmatprep.subr.mxu0 0.0
    %1385 = vmatpush2.msra.mxu0 0.0
    %1386 = vmatprep.subr.mxu0 0.0
    %1387 = vmatpush2.msra.mxu0 0.0
    %1388 = vmatprep.subr.mxu0 0.0
    %1389 = vmatpush2.msra.mxu0 0.0
    %1390 = vmatprep.mubr.f32.mxu0 0.0
    %1391 = vmatmul.mubr.f32.gmra.mxu0 %v1324
    %v1392 = vpop.f32.mrf.mxu0
    %v1393 = vadd.f32 %v186, %v1392
    %v1394 = vpop.f32.mrf.mxu0
    %1395 = vdwg.mxu0
    %v1396 = vtanh.pop %v1393
    %v1397 = vxor.u32 %v1393, 2147483648
    %v1398 = vmul.f32 %v1397, 1.442695
    %v1399 = vpow.pop %v1398
    %v1400 = vadd.f32 %v1399, 1.0
    %v1401 = vrcp.pop %v1400
    %v1402 = vmul.f32 1.0, %v1401
    %v1403 = vsel %vm191, %v1396, %v1402
    %v1404 = vmul.f32 %v1403, %v1209
    %1406 = vrot.lane.b32.xlu0 %v1403, 64
    %v1407 = vpop.permute.xlu0 %1406
    %v1409 = vmul.f32 %v1403, %v1407
    %1411 = vrot.lane.b32.xlu0 %v1409, 32
    %v1412 = vpop.permute.xlu0 %1411
    %v1414 = vadd.f32 %v1404, %v1412
    %v1415 = vtanh.pop %v1414
    %1417 = vrot.lane.b32.xlu0 %v1415, 64
    %v1418 = vpop.permute.xlu0 %1417
    %v1420 = vmul.f32 %v1403, %v1418
    %v1421 = vsel %vm192, %v1316, 0
    %1423 = vmatprep.subr.mxu0 0.0
    %1424 = vmatpush1.msra.mxu0 0.0
    %1425 = vmatprep.subr.mxu0 0.0
    %1426 = vmatpush1.msra.mxu0 0.0
    %1427 = vmatprep.subr.mxu0 0.0
    %1428 = vmatpush1.msra.mxu0 0.0
    %1429 = vmatprep.subr.mxu0 0.0
    %1430 = vmatpush1.msra.mxu0 0.0
    %1431 = vmatprep.subr.mxu0 0.0
    %1432 = vmatpush1.msra.mxu0 0.0
    %1433 = vmatprep.subr.mxu0 0.0
    %1434 = vmatpush1.msra.mxu0 0.0
    %1435 = vmatprep.subr.mxu0 0.0
    %1436 = vmatpush1.msra.mxu0 0.0
    %1437 = vmatprep.subr.mxu0 0.0
    %1438 = vmatpush1.msra.mxu0 0.0
    %1439 = vmatprep.subr.mxu0 0.0
    %1440 = vmatpush1.msra.mxu0 0.0
    %1441 = vmatprep.subr.mxu0 0.0
    %1442 = vmatpush1.msra.mxu0 0.0
    %1443 = vmatprep.subr.mxu0 0.0
    %1444 = vmatpush1.msra.mxu0 0.0
    %1445 = vmatprep.subr.mxu0 0.0
    %1446 = vmatpush1.msra.mxu0 0.0
    %1447 = vmatprep.subr.mxu0 0.0
    %1448 = vmatpush1.msra.mxu0 %v173
    %1449 = vmatprep.subr.mxu0 0.0
    %1450 = vmatpush1.msra.mxu0 %v172
    %1451 = vmatprep.subr.mxu0 0.0
    %1452 = vmatpush1.msra.mxu0 %v171
    %1453 = vmatprep.subr.mxu0 0.0
    %1454 = vmatpush1.msra.mxu0 %v170
    %1455 = vmatprep.subr.mxu0 0.0
    %1456 = vmatpush2.msra.mxu0 0.0
    %1457 = vmatprep.subr.mxu0 0.0
    %1458 = vmatpush2.msra.mxu0 0.0
    %1459 = vmatprep.subr.mxu0 0.0
    %1460 = vmatpush2.msra.mxu0 0.0
    %1461 = vmatprep.subr.mxu0 0.0
    %1462 = vmatpush2.msra.mxu0 0.0
    %1463 = vmatprep.subr.mxu0 0.0
    %1464 = vmatpush2.msra.mxu0 0.0
    %1465 = vmatprep.subr.mxu0 0.0
    %1466 = vmatpush2.msra.mxu0 0.0
    %1467 = vmatprep.subr.mxu0 0.0
    %1468 = vmatpush2.msra.mxu0 0.0
    %1469 = vmatprep.subr.mxu0 0.0
    %1470 = vmatpush2.msra.mxu0 0.0
    %1471 = vmatprep.subr.mxu0 0.0
    %1472 = vmatpush2.msra.mxu0 0.0
    %1473 = vmatprep.subr.mxu0 0.0
    %1474 = vmatpush2.msra.mxu0 0.0
    %1475 = vmatprep.subr.mxu0 0.0
    %1476 = vmatpush2.msra.mxu0 0.0
    %1477 = vmatprep.subr.mxu0 0.0
    %1478 = vmatpush2.msra.mxu0 0.0
    %1479 = vmatprep.subr.mxu0 0.0
    %1480 = vmatpush2.msra.mxu0 0.0
    %1481 = vmatprep.subr.mxu0 0.0
    %1482 = vmatpush2.msra.mxu0 0.0
    %1483 = vmatprep.subr.mxu0 0.0
    %1484 = vmatpush2.msra.mxu0 0.0
    %1485 = vmatprep.subr.mxu0 0.0
    %1486 = vmatpush2.msra.mxu0 0.0
    %1487 = vmatprep.mubr.f32.mxu0 0.0
    %1488 = vmatmul.mubr.f32.gmra.mxu0 %v1421
    %v1489 = vpop.f32.mrf.mxu0
    %v1490 = vadd.f32 0.0, %v1489
    %v1491 = vpop.f32.mrf.mxu0
    %1492 = vdwg.mxu0
    %v1493 = vadd.f32 %v162, %v1490
    %v1494 = vtanh.pop %v1493
    %v1495 = vxor.u32 %v1493, 2147483648
    %v1496 = vmul.f32 %v1495, 1.442695
    %v1497 = vpow.pop %v1496
    %v1498 = vadd.f32 %v1497, 1.0
    %v1499 = vrcp.pop %v1498
    %v1500 = vmul.f32 1.0, %v1499
    %v1501 = vsel %vm191, %v1494, %v1500
    %v1502 = vmul.f32 %v1501, %v1307
    %1504 = vrot.lane.b32.xlu0 %v1501, 64
    %v1505 = vpop.permute.xlu0 %1504
    %v1507 = vmul.f32 %v1501, %v1505
    %1509 = vrot.lane.b32.xlu0 %v1507, 32
    %v1510 = vpop.permute.xlu0 %1509
    %v1512 = vadd.f32 %v1502, %v1510
    %v1513 = vtanh.pop %v1512
    %1515 = vrot.lane.b32.xlu0 %v1513, 64
    %v1516 = vpop.permute.xlu0 %1515
    %v1518 = vmul.f32 %v1501, %v1516
    %1520 = vrot.lane.b32.xlu0 %v1518, 32
    %v1521 = vpop.permute.xlu0 %1520
    %1524 = vrot.lane.b32.xlu0 %v1420, 64
    %v1525 = vpop.permute.xlu0 %1524
    %v1527 = vsel %vm192, %v1521, %v1525
    %v1529 = vsel %vm297, %v1527, 0
    %1531 = vmatprep.subr.mxu0 0.0
    %1532 = vmatpush1.msra.mxu0 0.0
    %1533 = vmatprep.subr.mxu0 0.0
    %1534 = vmatpush1.msra.mxu0 0.0
    %1535 = vmatprep.subr.mxu0 0.0
    %1536 = vmatpush1.msra.mxu0 0.0
    %1537 = vmatprep.subr.mxu0 0.0
    %1538 = vmatpush1.msra.mxu0 0.0
    %1539 = vmatprep.subr.mxu0 0.0
    %1540 = vmatpush1.msra.mxu0 0.0
    %1541 = vmatprep.subr.mxu0 0.0
    %1542 = vmatpush1.msra.mxu0 0.0
    %1543 = vmatprep.subr.mxu0 0.0
    %1544 = vmatpush1.msra.mxu0 0.0
    %1545 = vmatprep.subr.mxu0 0.0
    %1546 = vmatpush1.msra.mxu0 0.0
    %1547 = vmatprep.subr.mxu0 0.0
    %1548 = vmatpush1.msra.mxu0 %v181
    %1549 = vmatprep.subr.mxu0 0.0
    %1550 = vmatpush1.msra.mxu0 %v180
    %1551 = vmatprep.subr.mxu0 0.0
    %1552 = vmatpush1.msra.mxu0 %v179
    %1553 = vmatprep.subr.mxu0 0.0
    %1554 = vmatpush1.msra.mxu0 %v178
    %1555 = vmatprep.subr.mxu0 0.0
    %1556 = vmatpush1.msra.mxu0 %v177
    %1557 = vmatprep.subr.mxu0 0.0
    %1558 = vmatpush1.msra.mxu0 %v176
    %1559 = vmatprep.subr.mxu0 0.0
    %1560 = vmatpush1.msra.mxu0 %v175
    %1561 = vmatprep.subr.mxu0 0.0
    %1562 = vmatpush1.msra.mxu0 %v174
    %1563 = vmatprep.subr.mxu0 0.0
    %1564 = vmatpush2.msra.mxu0 0.0
    %1565 = vmatprep.subr.mxu0 0.0
    %1566 = vmatpush2.msra.mxu0 0.0
    %1567 = vmatprep.subr.mxu0 0.0
    %1568 = vmatpush2.msra.mxu0 0.0
    %1569 = vmatprep.subr.mxu0 0.0
    %1570 = vmatpush2.msra.mxu0 0.0
    %1571 = vmatprep.subr.mxu0 0.0
    %1572 = vmatpush2.msra.mxu0 0.0
    %1573 = vmatprep.subr.mxu0 0.0
    %1574 = vmatpush2.msra.mxu0 0.0
    %1575 = vmatprep.subr.mxu0 0.0
    %1576 = vmatpush2.msra.mxu0 0.0
    %1577 = vmatprep.subr.mxu0 0.0
    %1578 = vmatpush2.msra.mxu0 0.0
    %1579 = vmatprep.subr.mxu0 0.0
    %1580 = vmatpush2.msra.mxu0 0.0
    %1581 = vmatprep.subr.mxu0 0.0
    %1582 = vmatpush2.msra.mxu0 0.0
    %1583 = vmatprep.subr.mxu0 0.0
    %1584 = vmatpush2.msra.mxu0 0.0
    %1585 = vmatprep.subr.mxu0 0.0
    %1586 = vmatpush2.msra.mxu0 0.0
    %1587 = vmatprep.subr.mxu0 0.0
    %1588 = vmatpush2.msra.mxu0 0.0
    %1589 = vmatprep.subr.mxu0 0.0
    %1590 = vmatpush2.msra.mxu0 0.0
    %1591 = vmatprep.subr.mxu0 0.0
    %1592 = vmatpush2.msra.mxu0 0.0
    %1593 = vmatprep.subr.mxu0 0.0
    %1594 = vmatpush2.msra.mxu0 0.0
    %1595 = vmatprep.mubr.f32.mxu0 0.0
    %1596 = vmatmul.mubr.f32.gmra.mxu0 %v1529
    %v1597 = vpop.f32.mrf.mxu0
    %v1598 = vadd.f32 %v186, %v1597
    %v1599 = vpop.f32.mrf.mxu0
    %1600 = vdwg.mxu0
    %v1601 = vtanh.pop %v1598
    %v1602 = vxor.u32 %v1598, 2147483648
    %v1603 = vmul.f32 %v1602, 1.442695
    %v1604 = vpow.pop %v1603
    %v1605 = vadd.f32 %v1604, 1.0
    %v1606 = vrcp.pop %v1605
    %v1607 = vmul.f32 1.0, %v1606
    %v1608 = vsel %vm191, %v1601, %v1607
    %v1609 = vmul.f32 %v1608, %v1414
    %1611 = vrot.lane.b32.xlu0 %v1608, 64
    %v1612 = vpop.permute.xlu0 %1611
    %v1614 = vmul.f32 %v1608, %v1612
    %1616 = vrot.lane.b32.xlu0 %v1614, 32
    %v1617 = vpop.permute.xlu0 %1616
    %v1619 = vadd.f32 %v1609, %v1617
    %v1620 = vtanh.pop %v1619
    %1622 = vrot.lane.b32.xlu0 %v1620, 64
    %v1623 = vpop.permute.xlu0 %1622
    %v1625 = vmul.f32 %v1608, %v1623
    %v1626 = vsel %vm192, %v1521, 0
    %1628 = vmatprep.subr.mxu0 0.0
    %1629 = vmatpush1.msra.mxu0 0.0
    %1630 = vmatprep.subr.mxu0 0.0
    %1631 = vmatpush1.msra.mxu0 0.0
    %1632 = vmatprep.subr.mxu0 0.0
    %1633 = vmatpush1.msra.mxu0 0.0
    %1634 = vmatprep.subr.mxu0 0.0
    %1635 = vmatpush1.msra.mxu0 0.0
    %1636 = vmatprep.subr.mxu0 0.0
    %1637 = vmatpush1.msra.mxu0 0.0
    %1638 = vmatprep.subr.mxu0 0.0
    %1639 = vmatpush1.msra.mxu0 0.0
    %1640 = vmatprep.subr.mxu0 0.0
    %1641 = vmatpush1.msra.mxu0 0.0
    %1642 = vmatprep.subr.mxu0 0.0
    %1643 = vmatpush1.msra.mxu0 0.0
    %1644 = vmatprep.subr.mxu0 0.0
    %1645 = vmatpush1.msra.mxu0 0.0
    %1646 = vmatprep.subr.mxu0 0.0
    %1647 = vmatpush1.msra.mxu0 0.0
    %1648 = vmatprep.subr.mxu0 0.0
    %1649 = vmatpush1.msra.mxu0 0.0
    %1650 = vmatprep.subr.mxu0 0.0
    %1651 = vmatpush1.msra.mxu0 0.0
    %1652 = vmatprep.subr.mxu0 0.0
    %1653 = vmatpush1.msra.mxu0 %v173
    %1654 = vmatprep.subr.mxu0 0.0
    %1655 = vmatpush1.msra.mxu0 %v172
    %1656 = vmatprep.subr.mxu0 0.0
    %1657 = vmatpush1.msra.mxu0 %v171
    %1658 = vmatprep.subr.mxu0 0.0
    %1659 = vmatpush1.msra.mxu0 %v170
    %1660 = vmatprep.subr.mxu0 0.0
    %1661 = vmatpush2.msra.mxu0 0.0
    %1662 = vmatprep.subr.mxu0 0.0
    %1663 = vmatpush2.msra.mxu0 0.0
    %1664 = vmatprep.subr.mxu0 0.0
    %1665 = vmatpush2.msra.mxu0 0.0
    %1666 = vmatprep.subr.mxu0 0.0
    %1667 = vmatpush2.msra.mxu0 0.0
    %1668 = vmatprep.subr.mxu0 0.0
    %1669 = vmatpush2.msra.mxu0 0.0
    %1670 = vmatprep.subr.mxu0 0.0
    %1671 = vmatpush2.msra.mxu0 0.0
    %1672 = vmatprep.subr.mxu0 0.0
    %1673 = vmatpush2.msra.mxu0 0.0
    %1674 = vmatprep.subr.mxu0 0.0
    %1675 = vmatpush2.msra.mxu0 0.0
    %1676 = vmatprep.subr.mxu0 0.0
    %1677 = vmatpush2.msra.mxu0 0.0
    %1678 = vmatprep.subr.mxu0 0.0
    %1679 = vmatpush2.msra.mxu0 0.0
    %1680 = vmatprep.subr.mxu0 0.0
    %1681 = vmatpush2.msra.mxu0 0.0
    %1682 = vmatprep.subr.mxu0 0.0
    %1683 = vmatpush2.msra.mxu0 0.0
    %1684 = vmatprep.subr.mxu0 0.0
    %1685 = vmatpush2.msra.mxu0 0.0
    %1686 = vmatprep.subr.mxu0 0.0
    %1687 = vmatpush2.msra.mxu0 0.0
    %1688 = vmatprep.subr.mxu0 0.0
    %1689 = vmatpush2.msra.mxu0 0.0
    %1690 = vmatprep.subr.mxu0 0.0
    %1691 = vmatpush2.msra.mxu0 0.0
    %1692 = vmatprep.mubr.f32.mxu0 0.0
    %1693 = vmatmul.mubr.f32.gmra.mxu0 %v1626
    %v1694 = vpop.f32.mrf.mxu0
    %v1695 = vadd.f32 0.0, %v1694
    %v1696 = vpop.f32.mrf.mxu0
    %1697 = vdwg.mxu0
    %v1698 = vadd.f32 %v167, %v1695
    %v1699 = vtanh.pop %v1698
    %v1700 = vxor.u32 %v1698, 2147483648
    %v1701 = vmul.f32 %v1700, 1.442695
    %v1702 = vpow.pop %v1701
    %v1703 = vadd.f32 %v1702, 1.0
    %v1704 = vrcp.pop %v1703
    %v1705 = vmul.f32 1.0, %v1704
    %v1706 = vsel %vm191, %v1699, %v1705
    %v1707 = vmul.f32 %v1706, %v1512
    %1709 = vrot.lane.b32.xlu0 %v1706, 64
    %v1710 = vpop.permute.xlu0 %1709
    %v1712 = vmul.f32 %v1706, %v1710
    %1714 = vrot.lane.b32.xlu0 %v1712, 32
    %v1715 = vpop.permute.xlu0 %1714
    %v1717 = vadd.f32 %v1707, %v1715
    %v1718 = vtanh.pop %v1717
    %1720 = vrot.lane.b32.xlu0 %v1718, 64
    %v1721 = vpop.permute.xlu0 %1720
    %v1723 = vmul.f32 %v1706, %v1721
    %1725 = vrot.lane.b32.xlu0 %v1723, 32
    %v1726 = vpop.permute.xlu0 %1725
    %1729 = vrot.lane.b32.xlu0 %v1625, 64
    %v1730 = vpop.permute.xlu0 %1729
    %v1732 = vsel %vm192, %v1726, %v1730
    %v1734 = vsel %vm297, %v1732, 0
    %1736 = vmatprep.subr.mxu0 0.0
    %1737 = vmatpush1.msra.mxu0 0.0
    %1738 = vmatprep.subr.mxu0 0.0
    %1739 = vmatpush1.msra.mxu0 0.0
    %1740 = vmatprep.subr.mxu0 0.0
    %1741 = vmatpush1.msra.mxu0 0.0
    %1742 = vmatprep.subr.mxu0 0.0
    %1743 = vmatpush1.msra.mxu0 0.0
    %1744 = vmatprep.subr.mxu0 0.0
    %1745 = vmatpush1.msra.mxu0 0.0
    %1746 = vmatprep.subr.mxu0 0.0
    %1747 = vmatpush1.msra.mxu0 0.0
    %1748 = vmatprep.subr.mxu0 0.0
    %1749 = vmatpush1.msra.mxu0 0.0
    %1750 = vmatprep.subr.mxu0 0.0
    %1751 = vmatpush1.msra.mxu0 0.0
    %1752 = vmatprep.subr.mxu0 0.0
    %1753 = vmatpush1.msra.mxu0 %v181
    %1754 = vmatprep.subr.mxu0 0.0
    %1755 = vmatpush1.msra.mxu0 %v180
    %1756 = vmatprep.subr.mxu0 0.0
    %1757 = vmatpush1.msra.mxu0 %v179
    %1758 = vmatprep.subr.mxu0 0.0
    %1759 = vmatpush1.msra.mxu0 %v178
    %1760 = vmatprep.subr.mxu0 0.0
    %1761 = vmatpush1.msra.mxu0 %v177
    %1762 = vmatprep.subr.mxu0 0.0
    %1763 = vmatpush1.msra.mxu0 %v176
    %1764 = vmatprep.subr.mxu0 0.0
    %1765 = vmatpush1.msra.mxu0 %v175
    %1766 = vmatprep.subr.mxu0 0.0
    %1767 = vmatpush1.msra.mxu0 %v174
    %1768 = vmatprep.subr.mxu0 0.0
    %1769 = vmatpush2.msra.mxu0 0.0
    %1770 = vmatprep.subr.mxu0 0.0
    %1771 = vmatpush2.msra.mxu0 0.0
    %1772 = vmatprep.subr.mxu0 0.0
    %1773 = vmatpush2.msra.mxu0 0.0
    %1774 = vmatprep.subr.mxu0 0.0
    %1775 = vmatpush2.msra.mxu0 0.0
    %1776 = vmatprep.subr.mxu0 0.0
    %1777 = vmatpush2.msra.mxu0 0.0
    %1778 = vmatprep.subr.mxu0 0.0
    %1779 = vmatpush2.msra.mxu0 0.0
    %1780 = vmatprep.subr.mxu0 0.0
    %1781 = vmatpush2.msra.mxu0 0.0
    %1782 = vmatprep.subr.mxu0 0.0
    %1783 = vmatpush2.msra.mxu0 0.0
    %1784 = vmatprep.subr.mxu0 0.0
    %1785 = vmatpush2.msra.mxu0 0.0
    %1786 = vmatprep.subr.mxu0 0.0
    %1787 = vmatpush2.msra.mxu0 0.0
    %1788 = vmatprep.subr.mxu0 0.0
    %1789 = vmatpush2.msra.mxu0 0.0
    %1790 = vmatprep.subr.mxu0 0.0
    %1791 = vmatpush2.msra.mxu0 0.0
    %1792 = vmatprep.subr.mxu0 0.0
    %1793 = vmatpush2.msra.mxu0 0.0
    %1794 = vmatprep.subr.mxu0 0.0
    %1795 = vmatpush2.msra.mxu0 0.0
    %1796 = vmatprep.subr.mxu0 0.0
    %1797 = vmatpush2.msra.mxu0 0.0
    %1798 = vmatprep.subr.mxu0 0.0
    %1799 = vmatpush2.msra.mxu0 0.0
    %1800 = vmatprep.mubr.f32.mxu0 0.0
    %1801 = vmatmul.mubr.f32.gmra.mxu0 %v1734
    %v1802 = vpop.f32.mrf.mxu0
    %v1803 = vadd.f32 %v186, %v1802
    %v1804 = vpop.f32.mrf.mxu0
    %1805 = vdwg.mxu0
    %v1806 = vtanh.pop %v1803
    %v1807 = vxor.u32 %v1803, 2147483648
    %v1808 = vmul.f32 %v1807, 1.442695
    %v1809 = vpow.pop %v1808
    %v1810 = vadd.f32 %v1809, 1.0
    %v1811 = vrcp.pop %v1810
    %v1812 = vmul.f32 1.0, %v1811
    %v1813 = vsel %vm191, %v1806, %v1812
    %v1814 = vmul.f32 %v1813, %v1619
    %1816 = vrot.lane.b32.xlu0 %v1813, 64
    %v1817 = vpop.permute.xlu0 %1816
    %v1819 = vmul.f32 %v1813, %v1817
    %1821 = vrot.lane.b32.xlu0 %v1819, 32
    %v1822 = vpop.permute.xlu0 %1821
    %v1824 = vadd.f32 %v1814, %v1822
    %v1825 = vtanh.pop %v1824
    %1827 = vrot.lane.b32.xlu0 %v1825, 64
    %v1828 = vpop.permute.xlu0 %1827
    %v1830 = vmul.f32 %v1813, %v1828
    %v1831 = vld [vmem:[#allocation2 + $0x80] sm:$0xff]
    %v1832 = vld [vmem:[#allocation2 + $0x88] sm:$0xff]
    %v1833 = vld [vmem:[#allocation2 + $0x90] sm:$0xff]
    %v1834 = vld [vmem:[#allocation2 + $0x98] sm:$0xff]
    %v1835 = vld [vmem:[#allocation2 + $0xa0] sm:$0x1]
    %v1836 = vlaneseq
    %v1837 = vshrl.u32 %v1836, 7
    %v1838 = vsub.s32 0, %v1837
    %v1839 = vrot.slane %v1835, %v1838
    %1841 = vrot.lane.b32.xlu0 %v1830, 32
    %v1842 = vpop.permute.xlu0 %1841
    %v1843 = vsel %vm192, %v1842, 0
    %1845 = vmatprep.subr.mxu0 0.0
    %1846 = vmatpush1.msra.mxu0 0.0
    %1847 = vmatprep.subr.mxu0 0.0
    %1848 = vmatpush1.msra.mxu0 0.0
    %1849 = vmatprep.subr.mxu0 0.0
    %1850 = vmatpush1.msra.mxu0 0.0
    %1851 = vmatprep.subr.mxu0 0.0
    %1852 = vmatpush1.msra.mxu0 0.0
    %1853 = vmatprep.subr.mxu0 0.0
    %1854 = vmatpush1.msra.mxu0 0.0
    %1855 = vmatprep.subr.mxu0 0.0
    %1856 = vmatpush1.msra.mxu0 0.0
    %1857 = vmatprep.subr.mxu0 0.0
    %1858 = vmatpush1.msra.mxu0 0.0
    %1859 = vmatprep.subr.mxu0 0.0
    %1860 = vmatpush1.msra.mxu0 0.0
    %1861 = vmatprep.subr.mxu0 0.0
    %1862 = vmatpush1.msra.mxu0 0.0
    %1863 = vmatprep.subr.mxu0 0.0
    %1864 = vmatpush1.msra.mxu0 0.0
    %1865 = vmatprep.subr.mxu0 0.0
    %1866 = vmatpush1.msra.mxu0 0.0
    %1867 = vmatprep.subr.mxu0 0.0
    %1868 = vmatpush1.msra.mxu0 0.0
    %1869 = vmatprep.subr.mxu0 0.0
    %1870 = vmatpush1.msra.mxu0 %v1834
    %1871 = vmatprep.subr.mxu0 0.0
    %1872 = vmatpush1.msra.mxu0 %v1833
    %1873 = vmatprep.subr.mxu0 0.0
    %1874 = vmatpush1.msra.mxu0 %v1832
    %1875 = vmatprep.subr.mxu0 0.0
    %1876 = vmatpush1.msra.mxu0 %v1831
    %1877 = vmatprep.subr.mxu0 0.0
    %1878 = vmatpush2.msra.mxu0 0.0
    %1879 = vmatprep.subr.mxu0 0.0
    %1880 = vmatpush2.msra.mxu0 0.0
    %1881 = vmatprep.subr.mxu0 0.0
    %1882 = vmatpush2.msra.mxu0 0.0
    %1883 = vmatprep.subr.mxu0 0.0
    %1884 = vmatpush2.msra.mxu0 0.0
    %1885 = vmatprep.subr.mxu0 0.0
    %1886 = vmatpush2.msra.mxu0 0.0
    %1887 = vmatprep.subr.mxu0 0.0
    %1888 = vmatpush2.msra.mxu0 0.0
    %1889 = vmatprep.subr.mxu0 0.0
    %1890 = vmatpush2.msra.mxu0 0.0
    %1891 = vmatprep.subr.mxu0 0.0
    %1892 = vmatpush2.msra.mxu0 0.0
    %1893 = vmatprep.subr.mxu0 0.0
    %1894 = vmatpush2.msra.mxu0 0.0
    %1895 = vmatprep.subr.mxu0 0.0
    %1896 = vmatpush2.msra.mxu0 0.0
    %1897 = vmatprep.subr.mxu0 0.0
    %1898 = vmatpush2.msra.mxu0 0.0
    %1899 = vmatprep.subr.mxu0 0.0
    %1900 = vmatpush2.msra.mxu0 0.0
    %1901 = vmatprep.subr.mxu0 0.0
    %1902 = vmatpush2.msra.mxu0 0.0
    %1903 = vmatprep.subr.mxu0 0.0
    %1904 = vmatpush2.msra.mxu0 0.0
    %1905 = vmatprep.subr.mxu0 0.0
    %1906 = vmatpush2.msra.mxu0 0.0
    %1907 = vmatprep.subr.mxu0 0.0
    %1908 = vmatpush2.msra.mxu0 0.0
    %1909 = vmatprep.mubr.f32.mxu0 0.0
    %1910 = vmatmul.mubr.f32.gmra.mxu0 %v1843
    %v1911 = vpop.f32.mrf.mxu0
    %v1912 = vadd.f32 %v1839, %v1911
    %v1913 = vpop.f32.mrf.mxu0
    %1914 = vdwg.mxu0
    %1915 = vrot.lane.b32.xlu0 %v1830, 96
    %v1916 = vpop.permute.xlu0 %1915
    %1919 = vrot.lane.b32.xlu0 %v1824, 64
    %v1920 = vpop.permute.xlu0 %1919
    %v1922 = vsel %vm192, %v1726, %v1717
    %v1923 = vsel %vm297, %v1922, %v1916
    %vm1924 = vcmask 785408
    %v1925 = vsel %vm1924, %v1923, %v1920
    %1926 = vst [vmem:[%s2] sm:$0xff] %v1912
    %1927 = vst [vmem:[%s2 + $0x8] sm:$0xff] %v1925
    // Predicated region
    $region14: #{lstm_model_forward.1} parent=1 // pred_check
      _
    $region15: #{lstm_model_forward.1} parent=1 // pred_check_branch
      %1929 = sbr.rel (0) target = $region17
    $region16: #{lstm_model_forward.1} parent=1 // pred_region
      _
    $region17: #{lstm_model_forward.1} parent=1 // pred_fallthru
      _
    // Predicated region
    $region18: #{lstm_model_forward.1} parent=1 // pred_check
      _
    $region19: #{lstm_model_forward.1} parent=1 // pred_check_branch
      %1931 = sbr.rel (0) target = $region21
    $region20: #{lstm_model_forward.1} parent=1 // pred_region
      _
    $region21: #{lstm_model_forward.1} parent=1 // pred_fallthru
      _
    %1932 = vsyncpa [#allocation3], 1

</llo_original>
